<compile_context>
chip_gen: v5e
topology: v5e:2x2
jax: 0.10.0
libtpu: 0.0.40
codegen_flags: <defaults>
</compile_context>

<pallas_src>
import math

import jax
import jax.numpy as jnp
from jax import lax
from jax.experimental import pallas as pl
from jax.experimental.pallas import tpu as pltpu

DIM = 200      # graph nodes (module-level `dim`)
R = 8          # reduced graph size == GCN in/out dim
HID = 16       # lin1 width
OUT_DIM = 2    # classifier output dim
C = 0.85       # GCN residual coefficient


def _softplus(x):
    # numerically stable softplus (matches torch.nn.functional.softplus)
    return jnp.maximum(x, 0.0) + jnp.log(1.0 + jnp.exp(-jnp.abs(x)))


def _gcn_layer(adj, xw, eye):
    # adj, xw: [R, R]   (xw == X @ W; for x=None, xw == W)
    axw = jnp.dot(adj, xw, preferred_element_type=jnp.float32)
    y_relu = jnp.maximum(eye + C * axw, 0.0)
    col_mean = jnp.mean(y_relu, axis=-2, keepdims=True) + 1e-6   # mean over rows
    return _softplus(y_relu / col_mean)


def fused_kernel(a_ref, kpt_ref, kp_ref, gcnw_ref, w1_ref, w2t_ref, b2eff_ref,
                 eye_ref, out_ref, red_ref):
    eye = eye_ref[...]
    ridx = lax.broadcasted_iota(jnp.int32, (R, R), 0)
    acc = jnp.zeros((R, HID), jnp.float32)            # per-row lin1 partial sums

    for br in range(2):                               # 0 = p branch, 1 = n branch
        adj = a_ref[0, br]                            # [DIM, DIM]
        kpt = jnp.maximum(kpt_ref[br], 0.0)           # relu(kernel)^T  [R, DIM]
        kp = jnp.maximum(kp_ref[br], 0.0)             # relu(kernel)    [DIM, R]

        # dim_reduce: K^T A K computed as (K^T A) K -> 200-wide MXU RHS.
        g = jnp.dot(kpt, adj, preferred_element_type=jnp.float32)        # [R, DIM]
        reduced = jnp.dot(g, kp, preferred_element_type=jnp.float32)     # [R, R]
        red_ref[0, :, br * R:(br + 1) * R] = reduced  # lane-dense combined output

        # GCN chain (x=None for the first layer -> AXW = reduced @ W1)
        c = _gcn_layer(reduced, gcnw_ref[br, 0], eye)
        c = _gcn_layer(reduced,
                       jnp.dot(c, gcnw_ref[br, 1], preferred_element_type=jnp.float32),
                       eye)
        c = _gcn_layer(reduced,
                       jnp.dot(c, gcnw_ref[br, 2], preferred_element_type=jnp.float32),
                       eye)

        # lin1 contribution of this branch, without flattening [R,R] -> [1,64]:
        #   sum_r c[r, :] @ W1_block[r]   (W1 pre-reshaped to [R*R, HID] on host)
        # Rows are selected by masking so every matmul keeps M=8.
        w1m = w1_ref[br]                              # [R*R, HID]
        for r in range(R):
            row_only = jnp.where(ridx == r, c, 0.0)   # keep only row r of c
            acc = acc + jnp.dot(row_only, w1m[r * R:(r + 1) * R, :],
                                preferred_element_type=jnp.float32)

    # Dropout(p=0.2) is identity in eval mode.  lin2 is applied before the row
    # reduction (purely linear, so equivalent); lin1's bias is folded into
    # b2eff = lin1_b @ lin2_w^T + lin2_b on the host.
    y = jnp.dot(acc, w2t_ref[...], preferred_element_type=jnp.float32)   # [R, OUT_DIM]
    out_ref[0] = jnp.sum(y, axis=0, keepdims=True) + b2eff_ref[...]


def _dim_reduce_losses(kernel, ortho_penalty, variance_penalty, neg_penalty):
    # parameter-only scalar regularizers (matches dim_reduce's self.losses)
    kp = jnp.maximum(kernel, 0.0)
    gram = kp.T @ kp                                   # [R, R]
    diag = jnp.diag(gram)
    ortho = ortho_penalty * jnp.sum(jnp.square(gram - jnp.diag(diag)))
    variance = variance_penalty * jnp.var(diag, ddof=1)    # torch .var() is unbiased
    neg = neg_penalty * jnp.sum(jnp.maximum(1e-6 - kernel, 0.0))
    l1 = 0.05 * jnp.sum(jnp.abs(kp))
    return ortho + variance + neg + l1
    # NOTE: the GCN modules append their neg_penalty losses to their OWN
    # self.losses (never read by model_gnn), so they are correctly excluded.


def model_forward(A, params):
    B = A.shape[0]

    # Tiny host-side packing of parameters (fused by XLA under jit).
    kpt = jnp.stack([params["kernel_p"].T, params["kernel_n"].T])        # [2, R, DIM]
    kp = jnp.stack([params["kernel_p"], params["kernel_n"]])             # [2, DIM, R]
    gcnw = jnp.stack(
        [jnp.stack([params["w1_p"], params["w2_p"], params["w3_p"]]),
         jnp.stack([params["w1_n"], params["w2_n"], params["w3_n"]])])   # [2, 3, R, R]

    # lin1 weight [HID, 2*R*R]: flattened input index f = r*(2R) + c with
    # c < R coming from p_conv3 and c >= R from n_conv3.
    w1t = params["lin1_w"].T.reshape(R, 2 * R, HID)
    w1 = jnp.stack([w1t[:, :R, :].reshape(R * R, HID),
                    w1t[:, R:, :].reshape(R * R, HID)])                  # [2, R*R, HID]
    w2t = params["lin2_w"].T                                             # [HID, OUT_DIM]
    b2eff = (params["lin1_b"] @ params["lin2_w"].T + params["lin2_b"])[None, :]
    eye = jnp.eye(R, dtype=jnp.float32)

    out3, red = pl.pallas_call(
        fused_kernel,
        out_shape=(jax.ShapeDtypeStruct((B, 1, OUT_DIM), jnp.float32),
                   jax.ShapeDtypeStruct((B, R, 2 * R), jnp.float32)),
        grid_spec=pltpu.PrefetchScalarGridSpec(
            num_scalar_prefetch=0,
            grid=(B,),
            in_specs=[
                pl.BlockSpec((1, 2, DIM, DIM), lambda b: (b, 0, 0, 0)),  # A[b]
                pl.BlockSpec((2, R, DIM), lambda b: (0, 0, 0)),
                pl.BlockSpec((2, DIM, R), lambda b: (0, 0, 0)),
                pl.BlockSpec((2, 3, R, R), lambda b: (0, 0, 0, 0)),
                pl.BlockSpec((2, R * R, HID), lambda b: (0, 0, 0)),
                pl.BlockSpec((HID, OUT_DIM), lambda b: (0, 0)),
                pl.BlockSpec((1, OUT_DIM), lambda b: (0, 0)),
                pl.BlockSpec((R, R), lambda b: (0, 0)),
            ],
            out_specs=[
                pl.BlockSpec((1, 1, OUT_DIM), lambda b: (b, 0, 0)),
                pl.BlockSpec((1, R, 2 * R), lambda b: (b, 0, 0)),
            ]),
        compiler_params=pltpu.CompilerParams(dimension_semantics=("parallel",)),
    )(A, kpt, kp, gcnw, w1, w2t, b2eff, eye)

    output = out3[:, 0, :]
    p_reduce = red[:, :, :R]
    n_reduce = red[:, :, R:]

    loss = (_dim_reduce_losses(params["kernel_p"], 0.2, 0.3, 0.1)
            + _dim_reduce_losses(params["kernel_n"], 0.2, 0.5, 0.1))
    return output, loss, p_reduce, n_reduce


def _reference_forward(A, params):
    # pure-JAX transcription of the torch forward (eval mode) for a sanity check
    At = jnp.transpose(A, (1, 0, 2, 3))
    eye = jnp.eye(R, dtype=jnp.float32)

    def gcn(x, adj, w):
        axw = adj @ w if x is None else adj @ (x @ w)
        y = jnp.maximum(eye + C * axw, 0.0)
        cm = jnp.mean(y, axis=-2, keepdims=True) + 1e-6
        return jax.nn.softplus(y / cm)

    def branch(adj, kern, w1, w2, w3):
        kr = jnp.maximum(kern, 0.0)
        af = jnp.einsum('bmn,ni->bmi', adj, kr)
        red = jnp.einsum('mi,bmj->bij', kr, af)
        c1 = gcn(None, red, w1)
        c2 = gcn(c1, red, w2)
        c3 = gcn(c2, red, w3)
        return red, c3

    p_red, p_c3 = branch(At[0], params["kernel_p"],
                         params["w1_p"], params["w2_p"], params["w3_p"])
    n_red, n_c3 = branch(At[1], params["kernel_n"],
                         params["w1_n"], params["w2_n"], params["w3_n"])
    cc = jnp.concatenate([p_c3, n_c3], axis=-1).reshape(-1, 2 * R * R)
    h = cc @ params["lin1_w"].T + params["lin1_b"]
    out = h @ params["lin2_w"].T + params["lin2_b"]
    return out, p_red, n_red


def init_params(key):
    # reset_weigths(): every parameter ~ U(-1/sqrt(dim), 1/sqrt(dim))
    stdv = 1.0 / math.sqrt(DIM)
    names_shapes = [
        ("kernel_p", (DIM, R)), ("kernel_n", (DIM, R)),
        ("w1_p", (R, R)), ("w2_p", (R, R)), ("w3_p", (R, R)),
        ("w1_n", (R, R)), ("w2_n", (R, R)), ("w3_n", (R, R)),
        ("lin1_w", (HID, 2 * R * R)), ("lin1_b", (HID,)),
        ("lin2_w", (OUT_DIM, HID)), ("lin2_b", (OUT_DIM,)),
    ]
    keys = jax.random.split(key, len(names_shapes))
    return {n: jax.random.uniform(k, s, jnp.float32, -stdv, stdv)
            for (n, s), k in zip(names_shapes, keys)}


if __name__ == "__main__":
    root = jax.random.PRNGKey(0)
    k_params, k_A = jax.random.split(root)
    params = init_params(k_params)

    batch = 2
    A = jax.random.uniform(k_A, (batch, 2, DIM, DIM), dtype=jnp.float32)

    fwd = jax.jit(model_forward)
    output, loss, p_reduce, n_reduce = fwd(A, params)
    jax.block_until_ready((output, loss, p_reduce, n_reduce))

    assert output.shape == (batch, OUT_DIM)
    assert p_reduce.shape == (batch, R, R) and n_reduce.shape == (batch, R, R)
    assert loss.shape == ()

    ref_out, ref_p, ref_n = _reference_forward(A, params)
    assert jnp.allclose(output, ref_out, rtol=2e-2, atol=2e-2)
    assert jnp.allclose(p_reduce, ref_p, rtol=2e-2, atol=2e-2)
    assert jnp.allclose(n_reduce, ref_n, rtol=2e-2, atol=2e-2)

    print("KERNEL_OK")
</pallas_src>

<mosaic_0001>
module attributes {stable_mosaic.version = 11 : i64} {
  func.func @fused_kernel(%arg0: i32, %arg1: memref<1x2x200x200xf32, #tpu.memory_space<vmem>>, %arg2: memref<2x8x200xf32, #tpu.memory_space<vmem>>, %arg3: memref<2x200x8xf32, #tpu.memory_space<vmem>>, %arg4: memref<2x3x8x8xf32, #tpu.memory_space<vmem>>, %arg5: memref<2x64x16xf32, #tpu.memory_space<vmem>>, %arg6: memref<16x2xf32, #tpu.memory_space<vmem>>, %arg7: memref<1x2xf32, #tpu.memory_space<vmem>>, %arg8: memref<8x8xf32, #tpu.memory_space<vmem>>, %arg9: memref<1x1x2xf32, #tpu.memory_space<vmem>>, %arg10: memref<1x8x16xf32, #tpu.memory_space<vmem>>) attributes {dimension_semantics = [#tpu.dimension_semantics<parallel>], iteration_bounds = array<i64: 2>, scalar_prefetch = 0 : i64, scratch_operands = 0 : i64, tpu.core_type = #tpu.core_type<tc>, window_params = [{transform_indices = @transform_0, window_bounds = array<i64: 1, 2, 200, 200>}, {pipeline_mode = #tpu.pipeline_mode<synchronous>, transform_indices = @transform_1, window_bounds = array<i64: 2, 8, 200>}, {pipeline_mode = #tpu.pipeline_mode<synchronous>, transform_indices = @transform_2, window_bounds = array<i64: 2, 200, 8>}, {pipeline_mode = #tpu.pipeline_mode<synchronous>, transform_indices = @transform_3, window_bounds = array<i64: 2, 3, 8, 8>}, {pipeline_mode = #tpu.pipeline_mode<synchronous>, transform_indices = @transform_4, window_bounds = array<i64: 2, 64, 16>}, {pipeline_mode = #tpu.pipeline_mode<synchronous>, transform_indices = @transform_5, window_bounds = array<i64: 16, 2>}, {pipeline_mode = #tpu.pipeline_mode<synchronous>, transform_indices = @transform_6, window_bounds = array<i64: 1, 2>}, {pipeline_mode = #tpu.pipeline_mode<synchronous>, transform_indices = @transform_7, window_bounds = array<i64: 8, 8>}, {transform_indices = @transform_8, window_bounds = array<i64: 1, 1, 2>}, {transform_indices = @transform_9, window_bounds = array<i64: 1, 8, 16>}]} {
    %c0 = arith.constant 0 : index
    %c0_0 = arith.constant 0 : index
    %0 = vector.load %arg8[%c0, %c0_0] : memref<8x8xf32, #tpu.memory_space<vmem>>, vector<8x8xf32>
    %1 = tpu.iota {dimensions = array<i32: 0>} : vector<8x8xi32>
    %cst = arith.constant 0.000000e+00 : f32
    %2 = vector.broadcast %cst : f32 to vector<8x16xf32>
    %c0_1 = arith.constant 0 : index
    %c0_2 = arith.constant 0 : index
    %c0_3 = arith.constant 0 : index
    %c0_4 = arith.constant 0 : index
    %3 = vector.load %arg1[%c0_1, %c0_2, %c0_3, %c0_4] : memref<1x2x200x200xf32, #tpu.memory_space<vmem>>, vector<1x1x200x200xf32>
    %4 = vector.shape_cast %3 : vector<1x1x200x200xf32> to vector<200x200xf32>
    %c0_5 = arith.constant 0 : index
    %c0_6 = arith.constant 0 : index
    %c0_7 = arith.constant 0 : index
    %5 = vector.load %arg2[%c0_5, %c0_6, %c0_7] : memref<2x8x200xf32, #tpu.memory_space<vmem>>, vector<1x8x200xf32>
    %6 = vector.shape_cast %5 : vector<1x8x200xf32> to vector<8x200xf32>
    %cst_8 = arith.constant 0.000000e+00 : f32
    %7 = vector.broadcast %cst_8 : f32 to vector<8x200xf32>
    %8 = arith.maximumf %6, %7 : vector<8x200xf32>
    %c0_9 = arith.constant 0 : index
    %c0_10 = arith.constant 0 : index
    %c0_11 = arith.constant 0 : index
    %9 = vector.load %arg3[%c0_9, %c0_10, %c0_11] : memref<2x200x8xf32, #tpu.memory_space<vmem>>, vector<1x200x8xf32>
    %10 = vector.shape_cast %9 : vector<1x200x8xf32> to vector<200x8xf32>
    %cst_12 = arith.constant 0.000000e+00 : f32
    %11 = vector.broadcast %cst_12 : f32 to vector<200x8xf32>
    %12 = arith.maximumf %10, %11 : vector<200x8xf32>
    %cst_13 = arith.constant dense<0.000000e+00> : vector<8x200xf32>
    %13 = tpu.matmul %8, %4, %cst_13 {dimension_numbers = #tpu.dot_dimension_numbers<[1], [0], [0], [1], [0, 0, 1, 1], [], []>} : vector<8x200xf32>, vector<200x200xf32>, vector<8x200xf32> -> vector<8x200xf32>
    %cst_14 = arith.constant dense<0.000000e+00> : vector<8x8xf32>
    %14 = tpu.matmul %13, %12, %cst_14 {dimension_numbers = #tpu.dot_dimension_numbers<[1], [0], [0], [1], [0, 0, 1, 1], [], []>} : vector<8x200xf32>, vector<200x8xf32>, vector<8x8xf32> -> vector<8x8xf32>
    %c0_15 = arith.constant 0 : index
    %c0_16 = arith.constant 0 : index
    %c0_17 = arith.constant 0 : index
    %15 = vector.load %arg10[%c0_15, %c0_16, %c0_17] : memref<1x8x16xf32, #tpu.memory_space<vmem>>, vector<1x8x8xf32>
    %16 = vector.shape_cast %15 : vector<1x8x8xf32> to vector<8x8xf32>
    %17 = vector.shape_cast %14 : vector<8x8xf32> to vector<1x8x8xf32>
    tpu.vector_store %arg10[%c0_15, %c0_16, %c0_17], %17 {strides = array<i32>} : memref<1x8x16xf32, #tpu.memory_space<vmem>>, vector<1x8x8xf32>,
    %c0_18 = arith.constant 0 : index
    %c0_19 = arith.constant 0 : index
    %c0_20 = arith.constant 0 : index
    %c0_21 = arith.constant 0 : index
    %18 = vector.load %arg4[%c0_18, %c0_19, %c0_20, %c0_21] : memref<2x3x8x8xf32, #tpu.memory_space<vmem>>, vector<1x1x8x8xf32>
    %19 = vector.shape_cast %18 : vector<1x1x8x8xf32> to vector<8x8xf32>
    %cst_22 = arith.constant dense<0.000000e+00> : vector<8x8xf32>
    %20 = tpu.matmul %14, %19, %cst_22 {dimension_numbers = #tpu.dot_dimension_numbers<[1], [0], [0], [1], [0, 0, 1, 1], [], []>} : vector<8x8xf32>, vector<8x8xf32>, vector<8x8xf32> -> vector<8x8xf32>
    %cst_23 = arith.constant 8.500000e-01 : f32
    %21 = vector.broadcast %cst_23 : f32 to vector<8x8xf32>
    %22 = arith.mulf %21, %20 : vector<8x8xf32>
    %23 = arith.addf %0, %22 : vector<8x8xf32>
    %cst_24 = arith.constant 0.000000e+00 : f32
    %24 = vector.broadcast %cst_24 : f32 to vector<8x8xf32>
    %25 = arith.maximumf %23, %24 : vector<8x8xf32>
    %cst_25 = arith.constant dense<0.000000e+00> : vector<8xf32>
    %26 = vector.multi_reduction <add>, %25, %cst_25 [0] : vector<8x8xf32> to vector<8xf32>
    %27 = vector.shape_cast %26 : vector<8xf32> to vector<1x8xf32>
    %cst_26 = arith.constant 8.000000e+00 : f32
    %28 = vector.broadcast %cst_26 : f32 to vector<1x8xf32>
    %29 = arith.divf %27, %28 : vector<1x8xf32>
    %cst_27 = arith.constant 9.99999997E-7 : f32
    %30 = vector.broadcast %cst_27 : f32 to vector<1x8xf32>
    %31 = arith.addf %29, %30 : vector<1x8xf32>
    %32 = vector.broadcast %31 : vector<1x8xf32> to vector<8x8xf32>
    %33 = arith.divf %25, %32 : vector<8x8xf32>
    %cst_28 = arith.constant 0.000000e+00 : f32
    %34 = vector.broadcast %cst_28 : f32 to vector<8x8xf32>
    %35 = arith.maximumf %33, %34 : vector<8x8xf32>
    %36 = math.absf %33 : vector<8x8xf32>
    %cst_29 = arith.constant 0.000000e+00 : f32
    %37 = vector.broadcast %cst_29 : f32 to vector<8x8xf32>
    %38 = arith.subf %37, %36 : vector<8x8xf32>
    %39 = math.exp %38 : vector<8x8xf32>
    %cst_30 = arith.constant 1.000000e+00 : f32
    %40 = vector.broadcast %cst_30 : f32 to vector<8x8xf32>
    %41 = arith.addf %40, %39 : vector<8x8xf32>
    %42 = math.log %41 : vector<8x8xf32>
    %43 = arith.addf %35, %42 : vector<8x8xf32>
    %c0_31 = arith.constant 0 : index
    %c1 = arith.constant 1 : index
    %c0_32 = arith.constant 0 : index
    %c0_33 = arith.constant 0 : index
    %44 = vector.load %arg4[%c0_31, %c1, %c0_32, %c0_33] : memref<2x3x8x8xf32, #tpu.memory_space<vmem>>, vector<1x1x8x8xf32>
    %45 = vector.shape_cast %44 : vector<1x1x8x8xf32> to vector<8x8xf32>
    %cst_34 = arith.constant dense<0.000000e+00> : vector<8x8xf32>
    %46 = tpu.matmul %43, %45, %cst_34 {dimension_numbers = #tpu.dot_dimension_numbers<[1], [0], [0], [1], [0, 0, 1, 1], [], []>} : vector<8x8xf32>, vector<8x8xf32>, vector<8x8xf32> -> vector<8x8xf32>
    %cst_35 = arith.constant dense<0.000000e+00> : vector<8x8xf32>
    %47 = tpu.matmul %14, %46, %cst_35 {dimension_numbers = #tpu.dot_dimension_numbers<[1], [0], [0], [1], [0, 0, 1, 1], [], []>} : vector<8x8xf32>, vector<8x8xf32>, vector<8x8xf32> -> vector<8x8xf32>
    %cst_36 = arith.constant 8.500000e-01 : f32
    %48 = vector.broadcast %cst_36 : f32 to vector<8x8xf32>
    %49 = arith.mulf %48, %47 : vector<8x8xf32>
    %50 = arith.addf %0, %49 : vector<8x8xf32>
    %cst_37 = arith.constant 0.000000e+00 : f32
    %51 = vector.broadcast %cst_37 : f32 to vector<8x8xf32>
    %52 = arith.maximumf %50, %51 : vector<8x8xf32>
    %cst_38 = arith.constant dense<0.000000e+00> : vector<8xf32>
    %53 = vector.multi_reduction <add>, %52, %cst_38 [0] : vector<8x8xf32> to vector<8xf32>
    %54 = vector.shape_cast %53 : vector<8xf32> to vector<1x8xf32>
    %cst_39 = arith.constant 8.000000e+00 : f32
    %55 = vector.broadcast %cst_39 : f32 to vector<1x8xf32>
    %56 = arith.divf %54, %55 : vector<1x8xf32>
    %cst_40 = arith.constant 9.99999997E-7 : f32
    %57 = vector.broadcast %cst_40 : f32 to vector<1x8xf32>
    %58 = arith.addf %56, %57 : vector<1x8xf32>
    %59 = vector.broadcast %58 : vector<1x8xf32> to vector<8x8xf32>
    %60 = arith.divf %52, %59 : vector<8x8xf32>
    %cst_41 = arith.constant 0.000000e+00 : f32
    %61 = vector.broadcast %cst_41 : f32 to vector<8x8xf32>
    %62 = arith.maximumf %60, %61 : vector<8x8xf32>
    %63 = math.absf %60 : vector<8x8xf32>
    %cst_42 = arith.constant 0.000000e+00 : f32
    %64 = vector.broadcast %cst_42 : f32 to vector<8x8xf32>
    %65 = arith.subf %64, %63 : vector<8x8xf32>
    %66 = math.exp %65 : vector<8x8xf32>
    %cst_43 = arith.constant 1.000000e+00 : f32
    %67 = vector.broadcast %cst_43 : f32 to vector<8x8xf32>
    %68 = arith.addf %67, %66 : vector<8x8xf32>
    %69 = math.log %68 : vector<8x8xf32>
    %70 = arith.addf %62, %69 : vector<8x8xf32>
    %c0_44 = arith.constant 0 : index
    %c2 = arith.constant 2 : index
    %c0_45 = arith.constant 0 : index
    %c0_46 = arith.constant 0 : index
    %71 = vector.load %arg4[%c0_44, %c2, %c0_45, %c0_46] : memref<2x3x8x8xf32, #tpu.memory_space<vmem>>, vector<1x1x8x8xf32>
    %72 = vector.shape_cast %71 : vector<1x1x8x8xf32> to vector<8x8xf32>
    %cst_47 = arith.constant dense<0.000000e+00> : vector<8x8xf32>
    %73 = tpu.matmul %70, %72, %cst_47 {dimension_numbers = #tpu.dot_dimension_numbers<[1], [0], [0], [1], [0, 0, 1, 1], [], []>} : vector<8x8xf32>, vector<8x8xf32>, vector<8x8xf32> -> vector<8x8xf32>
    %cst_48 = arith.constant dense<0.000000e+00> : vector<8x8xf32>
    %74 = tpu.matmul %14, %73, %cst_48 {dimension_numbers = #tpu.dot_dimension_numbers<[1], [0], [0], [1], [0, 0, 1, 1], [], []>} : vector<8x8xf32>, vector<8x8xf32>, vector<8x8xf32> -> vector<8x8xf32>
    %cst_49 = arith.constant 8.500000e-01 : f32
    %75 = vector.broadcast %cst_49 : f32 to vector<8x8xf32>
    %76 = arith.mulf %75, %74 : vector<8x8xf32>
    %77 = arith.addf %0, %76 : vector<8x8xf32>
    %cst_50 = arith.constant 0.000000e+00 : f32
    %78 = vector.broadcast %cst_50 : f32 to vector<8x8xf32>
    %79 = arith.maximumf %77, %78 : vector<8x8xf32>
    %cst_51 = arith.constant dense<0.000000e+00> : vector<8xf32>
    %80 = vector.multi_reduction <add>, %79, %cst_51 [0] : vector<8x8xf32> to vector<8xf32>
    %81 = vector.shape_cast %80 : vector<8xf32> to vector<1x8xf32>
    %cst_52 = arith.constant 8.000000e+00 : f32
    %82 = vector.broadcast %cst_52 : f32 to vector<1x8xf32>
    %83 = arith.divf %81, %82 : vector<1x8xf32>
    %cst_53 = arith.constant 9.99999997E-7 : f32
    %84 = vector.broadcast %cst_53 : f32 to vector<1x8xf32>
    %85 = arith.addf %83, %84 : vector<1x8xf32>
    %86 = vector.broadcast %85 : vector<1x8xf32> to vector<8x8xf32>
    %87 = arith.divf %79, %86 : vector<8x8xf32>
    %cst_54 = arith.constant 0.000000e+00 : f32
    %88 = vector.broadcast %cst_54 : f32 to vector<8x8xf32>
    %89 = arith.maximumf %87, %88 : vector<8x8xf32>
    %90 = math.absf %87 : vector<8x8xf32>
    %cst_55 = arith.constant 0.000000e+00 : f32
    %91 = vector.broadcast %cst_55 : f32 to vector<8x8xf32>
    %92 = arith.subf %91, %90 : vector<8x8xf32>
    %93 = math.exp %92 : vector<8x8xf32>
    %cst_56 = arith.constant 1.000000e+00 : f32
    %94 = vector.broadcast %cst_56 : f32 to vector<8x8xf32>
    %95 = arith.addf %94, %93 : vector<8x8xf32>
    %96 = math.log %95 : vector<8x8xf32>
    %97 = arith.addf %89, %96 : vector<8x8xf32>
    %c0_57 = arith.constant 0 : index
    %c0_58 = arith.constant 0 : index
    %c0_59 = arith.constant 0 : index
    %98 = vector.load %arg5[%c0_57, %c0_58, %c0_59] : memref<2x64x16xf32, #tpu.memory_space<vmem>>, vector<1x64x16xf32>
    %99 = vector.shape_cast %98 : vector<1x64x16xf32> to vector<64x16xf32>
    %c0_i32 = arith.constant 0 : i32
    %100 = vector.broadcast %c0_i32 : i32 to vector<8x8xi32>
    %101 = arith.cmpi eq, %1, %100 : vector<8x8xi32>
    %cst_60 = arith.constant 0.000000e+00 : f32
    %102 = vector.broadcast %cst_60 : f32 to vector<8x8xf32>
    %103 = arith.select %101, %97, %102 : vector<8x8xi1>, vector<8x8xf32>
    %104 = vector.extract_strided_slice %99 {offsets = [0, 0], sizes = [8, 16], strides = [1, 1]} : vector<64x16xf32> to vector<8x16xf32>
    %cst_61 = arith.constant dense<0.000000e+00> : vector<8x16xf32>
    %105 = tpu.matmul %103, %104, %cst_61 {dimension_numbers = #tpu.dot_dimension_numbers<[1], [0], [0], [1], [0, 0, 1, 1], [], []>} : vector<8x8xf32>, vector<8x16xf32>, vector<8x16xf32> -> vector<8x16xf32>
    %106 = arith.addf %2, %105 : vector<8x16xf32>
    %c1_i32 = arith.constant 1 : i32
    %107 = vector.broadcast %c1_i32 : i32 to vector<8x8xi32>
    %108 = arith.cmpi eq, %1, %107 : vector<8x8xi32>
    %cst_62 = arith.constant 0.000000e+00 : f32
    %109 = vector.broadcast %cst_62 : f32 to vector<8x8xf32>
    %110 = arith.select %108, %97, %109 : vector<8x8xi1>, vector<8x8xf32>
    %111 = vector.extract_strided_slice %99 {offsets = [8, 0], sizes = [8, 16], strides = [1, 1]} : vector<64x16xf32> to vector<8x16xf32>
    %cst_63 = arith.constant dense<0.000000e+00> : vector<8x16xf32>
    %112 = tpu.matmul %110, %111, %cst_63 {dimension_numbers = #tpu.dot_dimension_numbers<[1], [0], [0], [1], [0, 0, 1, 1], [], []>} : vector<8x8xf32>, vector<8x16xf32>, vector<8x16xf32> -> vector<8x16xf32>
    %113 = arith.addf %106, %112 : vector<8x16xf32>
    %c2_i32 = arith.constant 2 : i32
    %114 = vector.broadcast %c2_i32 : i32 to vector<8x8xi32>
    %115 = arith.cmpi eq, %1, %114 : vector<8x8xi32>
    %cst_64 = arith.constant 0.000000e+00 : f32
    %116 = vector.broadcast %cst_64 : f32 to vector<8x8xf32>
    %117 = arith.select %115, %97, %116 : vector<8x8xi1>, vector<8x8xf32>
    %118 = vector.extract_strided_slice %99 {offsets = [16, 0], sizes = [8, 16], strides = [1, 1]} : vector<64x16xf32> to vector<8x16xf32>
    %cst_65 = arith.constant dense<0.000000e+00> : vector<8x16xf32>
    %119 = tpu.matmul %117, %118, %cst_65 {dimension_numbers = #tpu.dot_dimension_numbers<[1], [0], [0], [1], [0, 0, 1, 1], [], []>} : vector<8x8xf32>, vector<8x16xf32>, vector<8x16xf32> -> vector<8x16xf32>
    %120 = arith.addf %113, %119 : vector<8x16xf32>
    %c3_i32 = arith.constant 3 : i32
    %121 = vector.broadcast %c3_i32 : i32 to vector<8x8xi32>
    %122 = arith.cmpi eq, %1, %121 : vector<8x8xi32>
    %cst_66 = arith.constant 0.000000e+00 : f32
    %123 = vector.broadcast %cst_66 : f32 to vector<8x8xf32>
    %124 = arith.select %122, %97, %123 : vector<8x8xi1>, vector<8x8xf32>
    %125 = vector.extract_strided_slice %99 {offsets = [24, 0], sizes = [8, 16], strides = [1, 1]} : vector<64x16xf32> to vector<8x16xf32>
    %cst_67 = arith.constant dense<0.000000e+00> : vector<8x16xf32>
    %126 = tpu.matmul %124, %125, %cst_67 {dimension_numbers = #tpu.dot_dimension_numbers<[1], [0], [0], [1], [0, 0, 1, 1], [], []>} : vector<8x8xf32>, vector<8x16xf32>, vector<8x16xf32> -> vector<8x16xf32>
    %127 = arith.addf %120, %126 : vector<8x16xf32>
    %c4_i32 = arith.constant 4 : i32
    %128 = vector.broadcast %c4_i32 : i32 to vector<8x8xi32>
    %129 = arith.cmpi eq, %1, %128 : vector<8x8xi32>
    %cst_68 = arith.constant 0.000000e+00 : f32
    %130 = vector.broadcast %cst_68 : f32 to vector<8x8xf32>
    %131 = arith.select %129, %97, %130 : vector<8x8xi1>, vector<8x8xf32>
    %132 = vector.extract_strided_slice %99 {offsets = [32, 0], sizes = [8, 16], strides = [1, 1]} : vector<64x16xf32> to vector<8x16xf32>
    %cst_69 = arith.constant dense<0.000000e+00> : vector<8x16xf32>
    %133 = tpu.matmul %131, %132, %cst_69 {dimension_numbers = #tpu.dot_dimension_numbers<[1], [0], [0], [1], [0, 0, 1, 1], [], []>} : vector<8x8xf32>, vector<8x16xf32>, vector<8x16xf32> -> vector<8x16xf32>
    %134 = arith.addf %127, %133 : vector<8x16xf32>
    %c5_i32 = arith.constant 5 : i32
    %135 = vector.broadcast %c5_i32 : i32 to vector<8x8xi32>
    %136 = arith.cmpi eq, %1, %135 : vector<8x8xi32>
    %cst_70 = arith.constant 0.000000e+00 : f32
    %137 = vector.broadcast %cst_70 : f32 to vector<8x8xf32>
    %138 = arith.select %136, %97, %137 : vector<8x8xi1>, vector<8x8xf32>
    %139 = vector.extract_strided_slice %99 {offsets = [40, 0], sizes = [8, 16], strides = [1, 1]} : vector<64x16xf32> to vector<8x16xf32>
    %cst_71 = arith.constant dense<0.000000e+00> : vector<8x16xf32>
    %140 = tpu.matmul %138, %139, %cst_71 {dimension_numbers = #tpu.dot_dimension_numbers<[1], [0], [0], [1], [0, 0, 1, 1], [], []>} : vector<8x8xf32>, vector<8x16xf32>, vector<8x16xf32> -> vector<8x16xf32>
    %141 = arith.addf %134, %140 : vector<8x16xf32>
    %c6_i32 = arith.constant 6 : i32
    %142 = vector.broadcast %c6_i32 : i32 to vector<8x8xi32>
    %143 = arith.cmpi eq, %1, %142 : vector<8x8xi32>
    %cst_72 = arith.constant 0.000000e+00 : f32
    %144 = vector.broadcast %cst_72 : f32 to vector<8x8xf32>
    %145 = arith.select %143, %97, %144 : vector<8x8xi1>, vector<8x8xf32>
    %146 = vector.extract_strided_slice %99 {offsets = [48, 0], sizes = [8, 16], strides = [1, 1]} : vector<64x16xf32> to vector<8x16xf32>
    %cst_73 = arith.constant dense<0.000000e+00> : vector<8x16xf32>
    %147 = tpu.matmul %145, %146, %cst_73 {dimension_numbers = #tpu.dot_dimension_numbers<[1], [0], [0], [1], [0, 0, 1, 1], [], []>} : vector<8x8xf32>, vector<8x16xf32>, vector<8x16xf32> -> vector<8x16xf32>
    %148 = arith.addf %141, %147 : vector<8x16xf32>
    %c7_i32 = arith.constant 7 : i32
    %149 = vector.broadcast %c7_i32 : i32 to vector<8x8xi32>
    %150 = arith.cmpi eq, %1, %149 : vector<8x8xi32>
    %cst_74 = arith.constant 0.000000e+00 : f32
    %151 = vector.broadcast %cst_74 : f32 to vector<8x8xf32>
    %152 = arith.select %150, %97, %151 : vector<8x8xi1>, vector<8x8xf32>
    %153 = vector.extract_strided_slice %99 {offsets = [56, 0], sizes = [8, 16], strides = [1, 1]} : vector<64x16xf32> to vector<8x16xf32>
    %cst_75 = arith.constant dense<0.000000e+00> : vector<8x16xf32>
    %154 = tpu.matmul %152, %153, %cst_75 {dimension_numbers = #tpu.dot_dimension_numbers<[1], [0], [0], [1], [0, 0, 1, 1], [], []>} : vector<8x8xf32>, vector<8x16xf32>, vector<8x16xf32> -> vector<8x16xf32>
    %155 = arith.addf %148, %154 : vector<8x16xf32>
    %c0_76 = arith.constant 0 : index
    %c1_77 = arith.constant 1 : index
    %c0_78 = arith.constant 0 : index
    %c0_79 = arith.constant 0 : index
    %156 = vector.load %arg1[%c0_76, %c1_77, %c0_78, %c0_79] : memref<1x2x200x200xf32, #tpu.memory_space<vmem>>, vector<1x1x200x200xf32>
    %157 = vector.shape_cast %156 : vector<1x1x200x200xf32> to vector<200x200xf32>
    %c1_80 = arith.constant 1 : index
    %c0_81 = arith.constant 0 : index
    %c0_82 = arith.constant 0 : index
    %158 = vector.load %arg2[%c1_80, %c0_81, %c0_82] : memref<2x8x200xf32, #tpu.memory_space<vmem>>, vector<1x8x200xf32>
    %159 = vector.shape_cast %158 : vector<1x8x200xf32> to vector<8x200xf32>
    %cst_83 = arith.constant 0.000000e+00 : f32
    %160 = vector.broadcast %cst_83 : f32 to vector<8x200xf32>
    %161 = arith.maximumf %159, %160 : vector<8x200xf32>
    %c1_84 = arith.constant 1 : index
    %c0_85 = arith.constant 0 : index
    %c0_86 = arith.constant 0 : index
    %162 = vector.load %arg3[%c1_84, %c0_85, %c0_86] : memref<2x200x8xf32, #tpu.memory_space<vmem>>, vector<1x200x8xf32>
    %163 = vector.shape_cast %162 : vector<1x200x8xf32> to vector<200x8xf32>
    %cst_87 = arith.constant 0.000000e+00 : f32
    %164 = vector.broadcast %cst_87 : f32 to vector<200x8xf32>
    %165 = arith.maximumf %163, %164 : vector<200x8xf32>
    %cst_88 = arith.constant dense<0.000000e+00> : vector<8x200xf32>
    %166 = tpu.matmul %161, %157, %cst_88 {dimension_numbers = #tpu.dot_dimension_numbers<[1], [0], [0], [1], [0, 0, 1, 1], [], []>} : vector<8x200xf32>, vector<200x200xf32>, vector<8x200xf32> -> vector<8x200xf32>
    %cst_89 = arith.constant dense<0.000000e+00> : vector<8x8xf32>
    %167 = tpu.matmul %166, %165, %cst_89 {dimension_numbers = #tpu.dot_dimension_numbers<[1], [0], [0], [1], [0, 0, 1, 1], [], []>} : vector<8x200xf32>, vector<200x8xf32>, vector<8x8xf32> -> vector<8x8xf32>
    %c0_90 = arith.constant 0 : index
    %c0_91 = arith.constant 0 : index
    %c8 = arith.constant 8 : index
    %168 = vector.load %arg10[%c0_90, %c0_91, %c8] : memref<1x8x16xf32, #tpu.memory_space<vmem>>, vector<1x8x8xf32>
    %169 = vector.shape_cast %168 : vector<1x8x8xf32> to vector<8x8xf32>
    %170 = vector.shape_cast %167 : vector<8x8xf32> to vector<1x8x8xf32>
    tpu.vector_store %arg10[%c0_90, %c0_91, %c8], %170 {strides = array<i32>} : memref<1x8x16xf32, #tpu.memory_space<vmem>>, vector<1x8x8xf32>,
    %c1_92 = arith.constant 1 : index
    %c0_93 = arith.constant 0 : index
    %c0_94 = arith.constant 0 : index
    %c0_95 = arith.constant 0 : index
    %171 = vector.load %arg4[%c1_92, %c0_93, %c0_94, %c0_95] : memref<2x3x8x8xf32, #tpu.memory_space<vmem>>, vector<1x1x8x8xf32>
    %172 = vector.shape_cast %171 : vector<1x1x8x8xf32> to vector<8x8xf32>
    %cst_96 = arith.constant dense<0.000000e+00> : vector<8x8xf32>
    %173 = tpu.matmul %167, %172, %cst_96 {dimension_numbers = #tpu.dot_dimension_numbers<[1], [0], [0], [1], [0, 0, 1, 1], [], []>} : vector<8x8xf32>, vector<8x8xf32>, vector<8x8xf32> -> vector<8x8xf32>
    %cst_97 = arith.constant 8.500000e-01 : f32
    %174 = vector.broadcast %cst_97 : f32 to vector<8x8xf32>
    %175 = arith.mulf %174, %173 : vector<8x8xf32>
    %176 = arith.addf %0, %175 : vector<8x8xf32>
    %cst_98 = arith.constant 0.000000e+00 : f32
    %177 = vector.broadcast %cst_98 : f32 to vector<8x8xf32>
    %178 = arith.maximumf %176, %177 : vector<8x8xf32>
    %cst_99 = arith.constant dense<0.000000e+00> : vector<8xf32>
    %179 = vector.multi_reduction <add>, %178, %cst_99 [0] : vector<8x8xf32> to vector<8xf32>
    %180 = vector.shape_cast %179 : vector<8xf32> to vector<1x8xf32>
    %cst_100 = arith.constant 8.000000e+00 : f32
    %181 = vector.broadcast %cst_100 : f32 to vector<1x8xf32>
    %182 = arith.divf %180, %181 : vector<1x8xf32>
    %cst_101 = arith.constant 9.99999997E-7 : f32
    %183 = vector.broadcast %cst_101 : f32 to vector<1x8xf32>
    %184 = arith.addf %182, %183 : vector<1x8xf32>
    %185 = vector.broadcast %184 : vector<1x8xf32> to vector<8x8xf32>
    %186 = arith.divf %178, %185 : vector<8x8xf32>
    %cst_102 = arith.constant 0.000000e+00 : f32
    %187 = vector.broadcast %cst_102 : f32 to vector<8x8xf32>
    %188 = arith.maximumf %186, %187 : vector<8x8xf32>
    %189 = math.absf %186 : vector<8x8xf32>
    %cst_103 = arith.constant 0.000000e+00 : f32
    %190 = vector.broadcast %cst_103 : f32 to vector<8x8xf32>
    %191 = arith.subf %190, %189 : vector<8x8xf32>
    %192 = math.exp %191 : vector<8x8xf32>
    %cst_104 = arith.constant 1.000000e+00 : f32
    %193 = vector.broadcast %cst_104 : f32 to vector<8x8xf32>
    %194 = arith.addf %193, %192 : vector<8x8xf32>
    %195 = math.log %194 : vector<8x8xf32>
    %196 = arith.addf %188, %195 : vector<8x8xf32>
    %c1_105 = arith.constant 1 : index
    %c1_106 = arith.constant 1 : index
    %c0_107 = arith.constant 0 : index
    %c0_108 = arith.constant 0 : index
    %197 = vector.load %arg4[%c1_105, %c1_106, %c0_107, %c0_108] : memref<2x3x8x8xf32, #tpu.memory_space<vmem>>, vector<1x1x8x8xf32>
    %198 = vector.shape_cast %197 : vector<1x1x8x8xf32> to vector<8x8xf32>
    %cst_109 = arith.constant dense<0.000000e+00> : vector<8x8xf32>
    %199 = tpu.matmul %196, %198, %cst_109 {dimension_numbers = #tpu.dot_dimension_numbers<[1], [0], [0], [1], [0, 0, 1, 1], [], []>} : vector<8x8xf32>, vector<8x8xf32>, vector<8x8xf32> -> vector<8x8xf32>
    %cst_110 = arith.constant dense<0.000000e+00> : vector<8x8xf32>
    %200 = tpu.matmul %167, %199, %cst_110 {dimension_numbers = #tpu.dot_dimension_numbers<[1], [0], [0], [1], [0, 0, 1, 1], [], []>} : vector<8x8xf32>, vector<8x8xf32>, vector<8x8xf32> -> vector<8x8xf32>
    %cst_111 = arith.constant 8.500000e-01 : f32
    %201 = vector.broadcast %cst_111 : f32 to vector<8x8xf32>
    %202 = arith.mulf %201, %200 : vector<8x8xf32>
    %203 = arith.addf %0, %202 : vector<8x8xf32>
    %cst_112 = arith.constant 0.000000e+00 : f32
    %204 = vector.broadcast %cst_112 : f32 to vector<8x8xf32>
    %205 = arith.maximumf %203, %204 : vector<8x8xf32>
    %cst_113 = arith.constant dense<0.000000e+00> : vector<8xf32>
    %206 = vector.multi_reduction <add>, %205, %cst_113 [0] : vector<8x8xf32> to vector<8xf32>
    %207 = vector.shape_cast %206 : vector<8xf32> to vector<1x8xf32>
    %cst_114 = arith.constant 8.000000e+00 : f32
    %208 = vector.broadcast %cst_114 : f32 to vector<1x8xf32>
    %209 = arith.divf %207, %208 : vector<1x8xf32>
    %cst_115 = arith.constant 9.99999997E-7 : f32
    %210 = vector.broadcast %cst_115 : f32 to vector<1x8xf32>
    %211 = arith.addf %209, %210 : vector<1x8xf32>
    %212 = vector.broadcast %211 : vector<1x8xf32> to vector<8x8xf32>
    %213 = arith.divf %205, %212 : vector<8x8xf32>
    %cst_116 = arith.constant 0.000000e+00 : f32
    %214 = vector.broadcast %cst_116 : f32 to vector<8x8xf32>
    %215 = arith.maximumf %213, %214 : vector<8x8xf32>
    %216 = math.absf %213 : vector<8x8xf32>
    %cst_117 = arith.constant 0.000000e+00 : f32
    %217 = vector.broadcast %cst_117 : f32 to vector<8x8xf32>
    %218 = arith.subf %217, %216 : vector<8x8xf32>
    %219 = math.exp %218 : vector<8x8xf32>
    %cst_118 = arith.constant 1.000000e+00 : f32
    %220 = vector.broadcast %cst_118 : f32 to vector<8x8xf32>
    %221 = arith.addf %220, %219 : vector<8x8xf32>
    %222 = math.log %221 : vector<8x8xf32>
    %223 = arith.addf %215, %222 : vector<8x8xf32>
    %c1_119 = arith.constant 1 : index
    %c2_120 = arith.constant 2 : index
    %c0_121 = arith.constant 0 : index
    %c0_122 = arith.constant 0 : index
    %224 = vector.load %arg4[%c1_119, %c2_120, %c0_121, %c0_122] : memref<2x3x8x8xf32, #tpu.memory_space<vmem>>, vector<1x1x8x8xf32>
    %225 = vector.shape_cast %224 : vector<1x1x8x8xf32> to vector<8x8xf32>
    %cst_123 = arith.constant dense<0.000000e+00> : vector<8x8xf32>
    %226 = tpu.matmul %223, %225, %cst_123 {dimension_numbers = #tpu.dot_dimension_numbers<[1], [0], [0], [1], [0, 0, 1, 1], [], []>} : vector<8x8xf32>, vector<8x8xf32>, vector<8x8xf32> -> vector<8x8xf32>
    %cst_124 = arith.constant dense<0.000000e+00> : vector<8x8xf32>
    %227 = tpu.matmul %167, %226, %cst_124 {dimension_numbers = #tpu.dot_dimension_numbers<[1], [0], [0], [1], [0, 0, 1, 1], [], []>} : vector<8x8xf32>, vector<8x8xf32>, vector<8x8xf32> -> vector<8x8xf32>
    %cst_125 = arith.constant 8.500000e-01 : f32
    %228 = vector.broadcast %cst_125 : f32 to vector<8x8xf32>
    %229 = arith.mulf %228, %227 : vector<8x8xf32>
    %230 = arith.addf %0, %229 : vector<8x8xf32>
    %cst_126 = arith.constant 0.000000e+00 : f32
    %231 = vector.broadcast %cst_126 : f32 to vector<8x8xf32>
    %232 = arith.maximumf %230, %231 : vector<8x8xf32>
    %cst_127 = arith.constant dense<0.000000e+00> : vector<8xf32>
    %233 = vector.multi_reduction <add>, %232, %cst_127 [0] : vector<8x8xf32> to vector<8xf32>
    %234 = vector.shape_cast %233 : vector<8xf32> to vector<1x8xf32>
    %cst_128 = arith.constant 8.000000e+00 : f32
    %235 = vector.broadcast %cst_128 : f32 to vector<1x8xf32>
    %236 = arith.divf %234, %235 : vector<1x8xf32>
    %cst_129 = arith.constant 9.99999997E-7 : f32
    %237 = vector.broadcast %cst_129 : f32 to vector<1x8xf32>
    %238 = arith.addf %236, %237 : vector<1x8xf32>
    %239 = vector.broadcast %238 : vector<1x8xf32> to vector<8x8xf32>
    %240 = arith.divf %232, %239 : vector<8x8xf32>
    %cst_130 = arith.constant 0.000000e+00 : f32
    %241 = vector.broadcast %cst_130 : f32 to vector<8x8xf32>
    %242 = arith.maximumf %240, %241 : vector<8x8xf32>
    %243 = math.absf %240 : vector<8x8xf32>
    %cst_131 = arith.constant 0.000000e+00 : f32
    %244 = vector.broadcast %cst_131 : f32 to vector<8x8xf32>
    %245 = arith.subf %244, %243 : vector<8x8xf32>
    %246 = math.exp %245 : vector<8x8xf32>
    %cst_132 = arith.constant 1.000000e+00 : f32
    %247 = vector.broadcast %cst_132 : f32 to vector<8x8xf32>
    %248 = arith.addf %247, %246 : vector<8x8xf32>
    %249 = math.log %248 : vector<8x8xf32>
    %250 = arith.addf %242, %249 : vector<8x8xf32>
    %c1_133 = arith.constant 1 : index
    %c0_134 = arith.constant 0 : index
    %c0_135 = arith.constant 0 : index
    %251 = vector.load %arg5[%c1_133, %c0_134, %c0_135] : memref<2x64x16xf32, #tpu.memory_space<vmem>>, vector<1x64x16xf32>
    %252 = vector.shape_cast %251 : vector<1x64x16xf32> to vector<64x16xf32>
    %c0_i32_136 = arith.constant 0 : i32
    %253 = vector.broadcast %c0_i32_136 : i32 to vector<8x8xi32>
    %254 = arith.cmpi eq, %1, %253 : vector<8x8xi32>
    %cst_137 = arith.constant 0.000000e+00 : f32
    %255 = vector.broadcast %cst_137 : f32 to vector<8x8xf32>
    %256 = arith.select %254, %250, %255 : vector<8x8xi1>, vector<8x8xf32>
    %257 = vector.extract_strided_slice %252 {offsets = [0, 0], sizes = [8, 16], strides = [1, 1]} : vector<64x16xf32> to vector<8x16xf32>
    %cst_138 = arith.constant dense<0.000000e+00> : vector<8x16xf32>
    %258 = tpu.matmul %256, %257, %cst_138 {dimension_numbers = #tpu.dot_dimension_numbers<[1], [0], [0], [1], [0, 0, 1, 1], [], []>} : vector<8x8xf32>, vector<8x16xf32>, vector<8x16xf32> -> vector<8x16xf32>
    %259 = arith.addf %155, %258 : vector<8x16xf32>
    %c1_i32_139 = arith.constant 1 : i32
    %260 = vector.broadcast %c1_i32_139 : i32 to vector<8x8xi32>
    %261 = arith.cmpi eq, %1, %260 : vector<8x8xi32>
    %cst_140 = arith.constant 0.000000e+00 : f32
    %262 = vector.broadcast %cst_140 : f32 to vector<8x8xf32>
    %263 = arith.select %261, %250, %262 : vector<8x8xi1>, vector<8x8xf32>
    %264 = vector.extract_strided_slice %252 {offsets = [8, 0], sizes = [8, 16], strides = [1, 1]} : vector<64x16xf32> to vector<8x16xf32>
    %cst_141 = arith.constant dense<0.000000e+00> : vector<8x16xf32>
    %265 = tpu.matmul %263, %264, %cst_141 {dimension_numbers = #tpu.dot_dimension_numbers<[1], [0], [0], [1], [0, 0, 1, 1], [], []>} : vector<8x8xf32>, vector<8x16xf32>, vector<8x16xf32> -> vector<8x16xf32>
    %266 = arith.addf %259, %265 : vector<8x16xf32>
    %c2_i32_142 = arith.constant 2 : i32
    %267 = vector.broadcast %c2_i32_142 : i32 to vector<8x8xi32>
    %268 = arith.cmpi eq, %1, %267 : vector<8x8xi32>
    %cst_143 = arith.constant 0.000000e+00 : f32
    %269 = vector.broadcast %cst_143 : f32 to vector<8x8xf32>
    %270 = arith.select %268, %250, %269 : vector<8x8xi1>, vector<8x8xf32>
    %271 = vector.extract_strided_slice %252 {offsets = [16, 0], sizes = [8, 16], strides = [1, 1]} : vector<64x16xf32> to vector<8x16xf32>
    %cst_144 = arith.constant dense<0.000000e+00> : vector<8x16xf32>
    %272 = tpu.matmul %270, %271, %cst_144 {dimension_numbers = #tpu.dot_dimension_numbers<[1], [0], [0], [1], [0, 0, 1, 1], [], []>} : vector<8x8xf32>, vector<8x16xf32>, vector<8x16xf32> -> vector<8x16xf32>
    %273 = arith.addf %266, %272 : vector<8x16xf32>
    %c3_i32_145 = arith.constant 3 : i32
    %274 = vector.broadcast %c3_i32_145 : i32 to vector<8x8xi32>
    %275 = arith.cmpi eq, %1, %274 : vector<8x8xi32>
    %cst_146 = arith.constant 0.000000e+00 : f32
    %276 = vector.broadcast %cst_146 : f32 to vector<8x8xf32>
    %277 = arith.select %275, %250, %276 : vector<8x8xi1>, vector<8x8xf32>
    %278 = vector.extract_strided_slice %252 {offsets = [24, 0], sizes = [8, 16], strides = [1, 1]} : vector<64x16xf32> to vector<8x16xf32>
    %cst_147 = arith.constant dense<0.000000e+00> : vector<8x16xf32>
    %279 = tpu.matmul %277, %278, %cst_147 {dimension_numbers = #tpu.dot_dimension_numbers<[1], [0], [0], [1], [0, 0, 1, 1], [], []>} : vector<8x8xf32>, vector<8x16xf32>, vector<8x16xf32> -> vector<8x16xf32>
    %280 = arith.addf %273, %279 : vector<8x16xf32>
    %c4_i32_148 = arith.constant 4 : i32
    %281 = vector.broadcast %c4_i32_148 : i32 to vector<8x8xi32>
    %282 = arith.cmpi eq, %1, %281 : vector<8x8xi32>
    %cst_149 = arith.constant 0.000000e+00 : f32
    %283 = vector.broadcast %cst_149 : f32 to vector<8x8xf32>
    %284 = arith.select %282, %250, %283 : vector<8x8xi1>, vector<8x8xf32>
    %285 = vector.extract_strided_slice %252 {offsets = [32, 0], sizes = [8, 16], strides = [1, 1]} : vector<64x16xf32> to vector<8x16xf32>
    %cst_150 = arith.constant dense<0.000000e+00> : vector<8x16xf32>
    %286 = tpu.matmul %284, %285, %cst_150 {dimension_numbers = #tpu.dot_dimension_numbers<[1], [0], [0], [1], [0, 0, 1, 1], [], []>} : vector<8x8xf32>, vector<8x16xf32>, vector<8x16xf32> -> vector<8x16xf32>
    %287 = arith.addf %280, %286 : vector<8x16xf32>
    %c5_i32_151 = arith.constant 5 : i32
    %288 = vector.broadcast %c5_i32_151 : i32 to vector<8x8xi32>
    %289 = arith.cmpi eq, %1, %288 : vector<8x8xi32>
    %cst_152 = arith.constant 0.000000e+00 : f32
    %290 = vector.broadcast %cst_152 : f32 to vector<8x8xf32>
    %291 = arith.select %289, %250, %290 : vector<8x8xi1>, vector<8x8xf32>
    %292 = vector.extract_strided_slice %252 {offsets = [40, 0], sizes = [8, 16], strides = [1, 1]} : vector<64x16xf32> to vector<8x16xf32>
    %cst_153 = arith.constant dense<0.000000e+00> : vector<8x16xf32>
    %293 = tpu.matmul %291, %292, %cst_153 {dimension_numbers = #tpu.dot_dimension_numbers<[1], [0], [0], [1], [0, 0, 1, 1], [], []>} : vector<8x8xf32>, vector<8x16xf32>, vector<8x16xf32> -> vector<8x16xf32>
    %294 = arith.addf %287, %293 : vector<8x16xf32>
    %c6_i32_154 = arith.constant 6 : i32
    %295 = vector.broadcast %c6_i32_154 : i32 to vector<8x8xi32>
    %296 = arith.cmpi eq, %1, %295 : vector<8x8xi32>
    %cst_155 = arith.constant 0.000000e+00 : f32
    %297 = vector.broadcast %cst_155 : f32 to vector<8x8xf32>
    %298 = arith.select %296, %250, %297 : vector<8x8xi1>, vector<8x8xf32>
    %299 = vector.extract_strided_slice %252 {offsets = [48, 0], sizes = [8, 16], strides = [1, 1]} : vector<64x16xf32> to vector<8x16xf32>
    %cst_156 = arith.constant dense<0.000000e+00> : vector<8x16xf32>
    %300 = tpu.matmul %298, %299, %cst_156 {dimension_numbers = #tpu.dot_dimension_numbers<[1], [0], [0], [1], [0, 0, 1, 1], [], []>} : vector<8x8xf32>, vector<8x16xf32>, vector<8x16xf32> -> vector<8x16xf32>
    %301 = arith.addf %294, %300 : vector<8x16xf32>
    %c7_i32_157 = arith.constant 7 : i32
    %302 = vector.broadcast %c7_i32_157 : i32 to vector<8x8xi32>
    %303 = arith.cmpi eq, %1, %302 : vector<8x8xi32>
    %cst_158 = arith.constant 0.000000e+00 : f32
    %304 = vector.broadcast %cst_158 : f32 to vector<8x8xf32>
    %305 = arith.select %303, %250, %304 : vector<8x8xi1>, vector<8x8xf32>
    %306 = vector.extract_strided_slice %252 {offsets = [56, 0], sizes = [8, 16], strides = [1, 1]} : vector<64x16xf32> to vector<8x16xf32>
    %cst_159 = arith.constant dense<0.000000e+00> : vector<8x16xf32>
    %307 = tpu.matmul %305, %306, %cst_159 {dimension_numbers = #tpu.dot_dimension_numbers<[1], [0], [0], [1], [0, 0, 1, 1], [], []>} : vector<8x8xf32>, vector<8x16xf32>, vector<8x16xf32> -> vector<8x16xf32>
    %308 = arith.addf %301, %307 : vector<8x16xf32>
    %c0_160 = arith.constant 0 : index
    %c0_161 = arith.constant 0 : index
    %309 = vector.load %arg6[%c0_160, %c0_161] : memref<16x2xf32, #tpu.memory_space<vmem>>, vector<16x2xf32>
    %cst_162 = arith.constant dense<0.000000e+00> : vector<8x2xf32>
    %310 = tpu.matmul %308, %309, %cst_162 {dimension_numbers = #tpu.dot_dimension_numbers<[1], [0], [0], [1], [0, 0, 1, 1], [], []>} : vector<8x16xf32>, vector<16x2xf32>, vector<8x2xf32> -> vector<8x2xf32>
    %cst_163 = arith.constant dense<0.000000e+00> : vector<2xf32>
    %311 = vector.multi_reduction <add>, %310, %cst_163 [0] : vector<8x2xf32> to vector<2xf32>
    %312 = vector.shape_cast %311 : vector<2xf32> to vector<1x2xf32>
    %c0_164 = arith.constant 0 : index
    %c0_165 = arith.constant 0 : index
    %313 = vector.load %arg7[%c0_164, %c0_165] : memref<1x2xf32, #tpu.memory_space<vmem>>, vector<1x2xf32>
    %314 = arith.addf %312, %313 : vector<1x2xf32>
    %c0_166 = arith.constant 0 : index
    %c0_167 = arith.constant 0 : index
    %c0_168 = arith.constant 0 : index
    %315 = vector.load %arg9[%c0_166, %c0_167, %c0_168] : memref<1x1x2xf32, #tpu.memory_space<vmem>>, vector<1x1x2xf32>
    %316 = vector.shape_cast %315 : vector<1x1x2xf32> to vector<1x2xf32>
    %317 = vector.shape_cast %314 : vector<1x2xf32> to vector<1x1x2xf32>
    tpu.vector_store %arg9[%c0_166, %c0_167, %c0_168], %317 {strides = array<i32>} : memref<1x1x2xf32, #tpu.memory_space<vmem>>, vector<1x1x2xf32>,
    return
  }
  func.func @transform_0(%arg0: i32) -> (i32, i32, i32, i32) {
    %c0_i32 = arith.constant 0 : i32
    %c0_i32_0 = arith.constant 0 : i32
    %c0_i32_1 = arith.constant 0 : i32
    %c0_i32_2 = arith.constant 0 : i32
    return %arg0, %c0_i32, %c0_i32_0, %c0_i32_1 : i32, i32, i32, i32
  }
  func.func @transform_1(%arg0: i32) -> (i32, i32, i32) {
    %c0_i32 = arith.constant 0 : i32
    %c0_i32_0 = arith.constant 0 : i32
    %c0_i32_1 = arith.constant 0 : i32
    %c0_i32_2 = arith.constant 0 : i32
    return %c0_i32, %c0_i32_0, %c0_i32_1 : i32, i32, i32
  }
  func.func @transform_2(%arg0: i32) -> (i32, i32, i32) {
    %c0_i32 = arith.constant 0 : i32
    %c0_i32_0 = arith.constant 0 : i32
    %c0_i32_1 = arith.constant 0 : i32
    %c0_i32_2 = arith.constant 0 : i32
    return %c0_i32, %c0_i32_0, %c0_i32_1 : i32, i32, i32
  }
  func.func @transform_3(%arg0: i32) -> (i32, i32, i32, i32) {
    %c0_i32 = arith.constant 0 : i32
    %c0_i32_0 = arith.constant 0 : i32
    %c0_i32_1 = arith.constant 0 : i32
    %c0_i32_2 = arith.constant 0 : i32
    %c0_i32_3 = arith.constant 0 : i32
    return %c0_i32, %c0_i32_0, %c0_i32_1, %c0_i32_2 : i32, i32, i32, i32
  }
  func.func @transform_4(%arg0: i32) -> (i32, i32, i32) {
    %c0_i32 = arith.constant 0 : i32
    %c0_i32_0 = arith.constant 0 : i32
    %c0_i32_1 = arith.constant 0 : i32
    %c0_i32_2 = arith.constant 0 : i32
    return %c0_i32, %c0_i32_0, %c0_i32_1 : i32, i32, i32
  }
  func.func @transform_5(%arg0: i32) -> (i32, i32) {
    %c0_i32 = arith.constant 0 : i32
    %c0_i32_0 = arith.constant 0 : i32
    %c0_i32_1 = arith.constant 0 : i32
    return %c0_i32, %c0_i32_0 : i32, i32
  }
  func.func @transform_6(%arg0: i32) -> (i32, i32) {
    %c0_i32 = arith.constant 0 : i32
    %c0_i32_0 = arith.constant 0 : i32
    %c0_i32_1 = arith.constant 0 : i32
    return %c0_i32, %c0_i32_0 : i32, i32
  }
  func.func @transform_7(%arg0: i32) -> (i32, i32) {
    %c0_i32 = arith.constant 0 : i32
    %c0_i32_0 = arith.constant 0 : i32
    %c0_i32_1 = arith.constant 0 : i32
    return %c0_i32, %c0_i32_0 : i32, i32
  }
  func.func @transform_8(%arg0: i32) -> (i32, i32, i32) {
    %c0_i32 = arith.constant 0 : i32
    %c0_i32_0 = arith.constant 0 : i32
    %c0_i32_1 = arith.constant 0 : i32
    return %arg0, %c0_i32, %c0_i32_0 : i32, i32, i32
  }
  func.func @transform_9(%arg0: i32) -> (i32, i32, i32) {
    %c0_i32 = arith.constant 0 : i32
    %c0_i32_0 = arith.constant 0 : i32
    %c0_i32_1 = arith.constant 0 : i32
    return %arg0, %c0_i32, %c0_i32_0 : i32, i32, i32
  }
}

</mosaic_0001>

<llo_original>
// kernel: model_forward.1
$region0: #{model_forward.1}
  #allocation0 [shape = 'u32[]', space=smem, size = 0x4, offset = 0x4, fixed_abs, tag = 'smem constant byte address 0x4 - core index']
  #allocation1 [shape = 'u32[72,128]{1,0:T(1,128)}', space=vmem, size = 0x9000, scoped, tag = 'internal scratch']
  %s0 = inlined_call_operand.hbm [shape: f32[2,2,200,200], index: 0, kind: input, shape index: {}]
  %s1 = inlined_call_operand.vmem [shape: f32[2,8,200], index: 1, kind: input, shape index: {}]
  %s2 = inlined_call_operand.vmem [shape: f32[2,200,8], index: 2, kind: input, shape index: {}]
  %s3 = inlined_call_operand.vmem [shape: f32[2,3,8,8], index: 3, kind: input, shape index: {}]
  %s4 = inlined_call_operand.vmem [shape: f32[2,64,16], index: 4, kind: input, shape index: {}]
  %s5 = inlined_call_operand.vmem [shape: f32[16,2], index: 5, kind: input, shape index: {}]
  %s6 = inlined_call_operand.vmem [shape: f32[1,2], index: 6, kind: input, shape index: {}]
  %s7 = inlined_call_operand.vmem [shape: f32[8,8], index: 7, kind: input, shape index: {}]
  %s8 = inlined_call_operand.hbm [shape: f32[2,1,2], index: 8, kind: output, shape index: {0}]
  %s9 = inlined_call_operand.vmem [shape: f32[2,8,16], index: 9, kind: output, shape index: {1}]
  %10 = xla_tuple %s8, %s9
  %s11 = sld [smem:[#allocation0]]
  $region77: #{model_forward.1} parent=0
    _
  %s13 = ssub.s32 1, %s11
  %s14 = scalar_select 0, %s13, %s11
  $region1: #{model_forward.1} parent=0
    #allocation2 [shape = 'u8[819200]{0}', space=vmem, size = 0xc8000, scoped, tag = 'input window, operand 0']
    #allocation3 [shape = 's32[2]{0}', space=sflag, size = 0x8, scoped, tag = 'scoped memory for model_forward.1']
    #allocation4 [shape = 's32[2]{0}', space=sflag, size = 0x8, scoped, tag = 'scoped memory for model_forward.1']
    #allocation5 [shape = 'u8[1024]{0}', space=vmem, size = 0x400, scoped, tag = 'output window, operand 0']
    %15 = vsyncpa [#allocation3], 0
    %s16 = scalar_lea.sflag [#allocation3], 1
    %17 = vsyncpa %s16, 0
    %18 = vsyncpa [#allocation4], 0
    %s19 = scalar_lea.sflag [#allocation4], 1
    %20 = vsyncpa %s19, 0
    loop: start=0, step=1, limit=4
    $region2: #{model_forward.1} parent=1 // loop_pre_header
      _
    $region3: #{model_forward.1} parent=1 // loop_header
      %s22 = sphi 0, %s26
      %p23 = scmp.ge.s32.totalorder %s22, 4
      %s32 = sphi 0, %s34
      %s35 = sphi 0, %s32
      %s36 = sphi 0, %s35
      %s52 = sphi 0, %s36
      %s56 = sphi 0, %s56
      %s58 = sphi 0, %s56
      %s59 = sphi 0, %s58
      %s73 = sphi 0, %s59
      %s77 = sphi 0, %s77
      %s79 = sphi 0, %s77
      %s80 = sphi 0, %s79
      %s94 = sphi 0, %s80
      %s98 = sphi 0, %s98
      %s100 = sphi 0, %s98
      %s101 = sphi 0, %s100
      %s115 = sphi 0, %s101
      %s119 = sphi 0, %s119
      %s121 = sphi 0, %s119
      %s122 = sphi 0, %s121
      %s136 = sphi 0, %s122
      %s140 = sphi 0, %s140
      %s142 = sphi 0, %s140
      %s143 = sphi 0, %s142
      %s157 = sphi 0, %s143
      %s161 = sphi 0, %s161
      %s163 = sphi 0, %s161
      %s164 = sphi 0, %s163
      %s178 = sphi 0, %s164
      %s182 = sphi 0, %s182
      %s184 = sphi 0, %s182
      %s185 = sphi 0, %s184
      %s199 = sphi 0, %s185
      %s205 = sphi 0, %s207
      %s208 = sphi 0, %s205
      %s209 = sphi 0, %s208
      %s225 = sphi 0, %s209
      %s231 = sphi 0, %s233
      %s234 = sphi 0, %s231
      %s235 = sphi 0, %s234
      %s251 = sphi 0, %s235
    $region4: #{model_forward.1} parent=1 // loop_header_branch
      %25 = sbr.rel (%p23) target = $region8
    $region5: #{model_forward.1} parent=1 // loop_body
      %s27 = ssub.s32 %s22, 1
      %s28 = ssub.s32 %s22, 2
      %s29 = sadd.s32 %s22, 1
      %s30 = ssub.s32 %s22, %s29
      %p31 = scmp.eq.s32.totalorder %s30, 0
      %s33 = sadd.s32 %s32, 1
      %s34 = scalar_select %p31, %s32, %s33
      %p37 = pneg %p31
      %p38 = scmp.eq.s32.totalorder %s22, 1
      %p39 = por %p37, %p38
      %p40 = scmp.ne.s32.totalorder %s32, %s35
      %p41 = scmp.eq.s32.totalorder %s22, 0
      %p42 = por %p40, %p41
      %p43 = scmp.ne.s32.totalorder %s32, %s35
      %p44 = scmp.eq.s32.totalorder %s27, 1
      %p45 = por %p43, %p44
      %p46 = scmp.ne.s32.totalorder %s35, %s36
      %p47 = scmp.eq.s32.totalorder %s27, 0
      %p48 = por %p46, %p47
      %p49 = scmp.ne.s32.totalorder %s35, %s36
      %p50 = scmp.eq.s32.totalorder %s28, 1
      %p51 = por %p49, %p50
      %p53 = scmp.ne.s32.totalorder %s36, %s52
      %p54 = scmp.eq.s32.totalorder %s28, 0
      %p55 = por %p53, %p54
      %s57 = sadd.s32 %s56, 1
      %p60 = scmp.eq.s32.totalorder %s22, 1
      %p61 = scmp.ne.s32.totalorder %s56, %s58
      %p62 = scmp.eq.s32.totalorder %s22, 0
      %p63 = por %p61, %p62
      %p64 = scmp.ne.s32.totalorder %s56, %s58
      %p65 = scmp.eq.s32.totalorder %s27, 1
      %p66 = por %p64, %p65
      %p67 = scmp.ne.s32.totalorder %s58, %s59
      %p68 = scmp.eq.s32.totalorder %s27, 0
      %p69 = por %p67, %p68
      %p70 = scmp.ne.s32.totalorder %s58, %s59
      %p71 = scmp.eq.s32.totalorder %s28, 1
      %p72 = por %p70, %p71
      %p74 = scmp.ne.s32.totalorder %s59, %s73
      %p75 = scmp.eq.s32.totalorder %s28, 0
      %p76 = por %p74, %p75
      %s78 = sadd.s32 %s77, 1
      %p81 = scmp.eq.s32.totalorder %s22, 1
      %p82 = scmp.ne.s32.totalorder %s77, %s79
      %p83 = scmp.eq.s32.totalorder %s22, 0
      %p84 = por %p82, %p83
      %p85 = scmp.ne.s32.totalorder %s77, %s79
      %p86 = scmp.eq.s32.totalorder %s27, 1
      %p87 = por %p85, %p86
      %p88 = scmp.ne.s32.totalorder %s79, %s80
      %p89 = scmp.eq.s32.totalorder %s27, 0
      %p90 = por %p88, %p89
      %p91 = scmp.ne.s32.totalorder %s79, %s80
      %p92 = scmp.eq.s32.totalorder %s28, 1
      %p93 = por %p91, %p92
      %p95 = scmp.ne.s32.totalorder %s80, %s94
      %p96 = scmp.eq.s32.totalorder %s28, 0
      %p97 = por %p95, %p96
      %s99 = sadd.s32 %s98, 1
      %p102 = scmp.eq.s32.totalorder %s22, 1
      %p103 = scmp.ne.s32.totalorder %s98, %s100
      %p104 = scmp.eq.s32.totalorder %s22, 0
      %p105 = por %p103, %p104
      %p106 = scmp.ne.s32.totalorder %s98, %s100
      %p107 = scmp.eq.s32.totalorder %s27, 1
      %p108 = por %p106, %p107
      %p109 = scmp.ne.s32.totalorder %s100, %s101
      %p110 = scmp.eq.s32.totalorder %s27, 0
      %p111 = por %p109, %p110
      %p112 = scmp.ne.s32.totalorder %s100, %s101
      %p113 = scmp.eq.s32.totalorder %s28, 1
      %p114 = por %p112, %p113
      %p116 = scmp.ne.s32.totalorder %s101, %s115
      %p117 = scmp.eq.s32.totalorder %s28, 0
      %p118 = por %p116, %p117
      %s120 = sadd.s32 %s119, 1
      %p123 = scmp.eq.s32.totalorder %s22, 1
      %p124 = scmp.ne.s32.totalorder %s119, %s121
      %p125 = scmp.eq.s32.totalorder %s22, 0
      %p126 = por %p124, %p125
      %p127 = scmp.ne.s32.totalorder %s119, %s121
      %p128 = scmp.eq.s32.totalorder %s27, 1
      %p129 = por %p127, %p128
      %p130 = scmp.ne.s32.totalorder %s121, %s122
      %p131 = scmp.eq.s32.totalorder %s27, 0
      %p132 = por %p130, %p131
      %p133 = scmp.ne.s32.totalorder %s121, %s122
      %p134 = scmp.eq.s32.totalorder %s28, 1
      %p135 = por %p133, %p134
      %p137 = scmp.ne.s32.totalorder %s122, %s136
      %p138 = scmp.eq.s32.totalorder %s28, 0
      %p139 = por %p137, %p138
      %s141 = sadd.s32 %s140, 1
      %p144 = scmp.eq.s32.totalorder %s22, 1
      %p145 = scmp.ne.s32.totalorder %s140, %s142
      %p146 = scmp.eq.s32.totalorder %s22, 0
      %p147 = por %p145, %p146
      %p148 = scmp.ne.s32.totalorder %s140, %s142
      %p149 = scmp.eq.s32.totalorder %s27, 1
      %p150 = por %p148, %p149
      %p151 = scmp.ne.s32.totalorder %s142, %s143
      %p152 = scmp.eq.s32.totalorder %s27, 0
      %p153 = por %p151, %p152
      %p154 = scmp.ne.s32.totalorder %s142, %s143
      %p155 = scmp.eq.s32.totalorder %s28, 1
      %p156 = por %p154, %p155
      %p158 = scmp.ne.s32.totalorder %s143, %s157
      %p159 = scmp.eq.s32.totalorder %s28, 0
      %p160 = por %p158, %p159
      %s162 = sadd.s32 %s161, 1
      %p165 = scmp.eq.s32.totalorder %s22, 1
      %p166 = scmp.ne.s32.totalorder %s161, %s163
      %p167 = scmp.eq.s32.totalorder %s22, 0
      %p168 = por %p166, %p167
      %p169 = scmp.ne.s32.totalorder %s161, %s163
      %p170 = scmp.eq.s32.totalorder %s27, 1
      %p171 = por %p169, %p170
      %p172 = scmp.ne.s32.totalorder %s163, %s164
      %p173 = scmp.eq.s32.totalorder %s27, 0
      %p174 = por %p172, %p173
      %p175 = scmp.ne.s32.totalorder %s163, %s164
      %p176 = scmp.eq.s32.totalorder %s28, 1
      %p177 = por %p175, %p176
      %p179 = scmp.ne.s32.totalorder %s164, %s178
      %p180 = scmp.eq.s32.totalorder %s28, 0
      %p181 = por %p179, %p180
      %s183 = sadd.s32 %s182, 1
      %p186 = scmp.eq.s32.totalorder %s22, 1
      %p187 = scmp.ne.s32.totalorder %s182, %s184
      %p188 = scmp.eq.s32.totalorder %s22, 0
      %p189 = por %p187, %p188
      %p190 = scmp.ne.s32.totalorder %s182, %s184
      %p191 = scmp.eq.s32.totalorder %s27, 1
      %p192 = por %p190, %p191
      %p193 = scmp.ne.s32.totalorder %s184, %s185
      %p194 = scmp.eq.s32.totalorder %s27, 0
      %p195 = por %p193, %p194
      %p196 = scmp.ne.s32.totalorder %s184, %s185
      %p197 = scmp.eq.s32.totalorder %s28, 1
      %p198 = por %p196, %p197
      %p200 = scmp.ne.s32.totalorder %s185, %s199
      %p201 = scmp.eq.s32.totalorder %s28, 0
      %p202 = por %p200, %p201
      %s203 = ssub.s32 %s22, %s29
      %p204 = scmp.eq.s32.totalorder %s203, 0
      %s206 = sadd.s32 %s205, 1
      %s207 = scalar_select %p204, %s205, %s206
      %p210 = pneg %p204
      %p211 = scmp.eq.s32.totalorder %s22, 1
      %p212 = por %p210, %p211
      %p213 = scmp.ne.s32.totalorder %s205, %s208
      %p214 = scmp.eq.s32.totalorder %s22, 0
      %p215 = por %p213, %p214
      %p216 = scmp.ne.s32.totalorder %s205, %s208
      %p217 = scmp.eq.s32.totalorder %s27, 1
      %p218 = por %p216, %p217
      %p219 = scmp.ne.s32.totalorder %s208, %s209
      %p220 = scmp.eq.s32.totalorder %s27, 0
      %p221 = por %p219, %p220
      %p222 = scmp.ne.s32.totalorder %s208, %s209
      %p223 = scmp.eq.s32.totalorder %s28, 1
      %p224 = por %p222, %p223
      %p226 = scmp.ne.s32.totalorder %s209, %s225
      %p227 = scmp.eq.s32.totalorder %s28, 0
      %p228 = por %p226, %p227
      %s229 = ssub.s32 %s22, %s29
      %p230 = scmp.eq.s32.totalorder %s229, 0
      %s232 = sadd.s32 %s231, 1
      %s233 = scalar_select %p230, %s231, %s232
      %p236 = pneg %p230
      %p237 = scmp.eq.s32.totalorder %s22, 1
      %p238 = por %p236, %p237
      %p239 = scmp.ne.s32.totalorder %s231, %s234
      %p240 = scmp.eq.s32.totalorder %s22, 0
      %p241 = por %p239, %p240
      %p242 = scmp.ne.s32.totalorder %s231, %s234
      %p243 = scmp.eq.s32.totalorder %s27, 1
      %p244 = por %p242, %p243
      %p245 = scmp.ne.s32.totalorder %s234, %s235
      %p246 = scmp.eq.s32.totalorder %s27, 0
      %p247 = por %p245, %p246
      %p248 = scmp.ne.s32.totalorder %s234, %s235
      %p249 = scmp.eq.s32.totalorder %s28, 1
      %p250 = por %p248, %p249
      %p252 = scmp.ne.s32.totalorder %s235, %s251
      %p253 = scmp.eq.s32.totalorder %s28, 0
      %p254 = por %p252, %p253
      %p255 = scmp.le.s32.totalorder 1, %s22
      %p256 = scmp.lt.s32.totalorder %s22, 3
      %p257 = pnand %p255, %p256
      %p258 = pneg %p257
      // Predicated region
      $region9: #{model_forward.1} parent=5 // pred_check
        _
      $region10: #{model_forward.1} parent=5 // pred_check_branch
        %260 = sbr.rel (%p257) target = $region12
      $region11: #{model_forward.1} parent=5 // pred_region
        %s261 = ssub.s32 %s22, 1
        // Predicated region
        $region13: #{model_forward.1} parent=11 // pred_check
          %p262 = pneg %p69
        $region14: #{model_forward.1} parent=11 // pred_check_branch
          %264 = sbr.rel (%p262) target = $region16
        $region15: #{model_forward.1} parent=11 // pred_region
          _
        $region16: #{model_forward.1} parent=11 // pred_fallthru
          _
        // Predicated region
        $region17: #{model_forward.1} parent=11 // pred_check
          %p265 = pneg %p90
        $region18: #{model_forward.1} parent=11 // pred_check_branch
          %267 = sbr.rel (%p265) target = $region20
        $region19: #{model_forward.1} parent=11 // pred_region
          _
        $region20: #{model_forward.1} parent=11 // pred_fallthru
          _
        // Predicated region
        $region21: #{model_forward.1} parent=11 // pred_check
          %p268 = pneg %p111
        $region22: #{model_forward.1} parent=11 // pred_check_branch
          %270 = sbr.rel (%p268) target = $region24
        $region23: #{model_forward.1} parent=11 // pred_region
          _
        $region24: #{model_forward.1} parent=11 // pred_fallthru
          _
        // Predicated region
        $region25: #{model_forward.1} parent=11 // pred_check
          %p271 = pneg %p132
        $region26: #{model_forward.1} parent=11 // pred_check_branch
          %273 = sbr.rel (%p271) target = $region28
        $region27: #{model_forward.1} parent=11 // pred_region
          _
        $region28: #{model_forward.1} parent=11 // pred_fallthru
          _
        // Predicated region
        $region29: #{model_forward.1} parent=11 // pred_check
          %p274 = pneg %p153
        $region30: #{model_forward.1} parent=11 // pred_check_branch
          %276 = sbr.rel (%p274) target = $region32
        $region31: #{model_forward.1} parent=11 // pred_region
          _
        $region32: #{model_forward.1} parent=11 // pred_fallthru
          _
        // Predicated region
        $region33: #{model_forward.1} parent=11 // pred_check
          %p277 = pneg %p174
        $region34: #{model_forward.1} parent=11 // pred_check_branch
          %279 = sbr.rel (%p277) target = $region36
        $region35: #{model_forward.1} parent=11 // pred_region
          _
        $region36: #{model_forward.1} parent=11 // pred_fallthru
          _
        // Predicated region
        $region37: #{model_forward.1} parent=11 // pred_check
          %p280 = pneg %p195
        $region38: #{model_forward.1} parent=11 // pred_check_branch
          %282 = sbr.rel (%p280) target = $region40
        $region39: #{model_forward.1} parent=11 // pred_region
          _
        $region40: #{model_forward.1} parent=11 // pred_fallthru
          _
      $region12: #{model_forward.1} parent=5 // pred_fallthru
        _
      %p283 = scmp.lt.s32.totalorder %s22, 2
      // Predicated region
      $region41: #{model_forward.1} parent=5 // pred_check
        %p284 = pneg %p283
      $region42: #{model_forward.1} parent=5 // pred_check_branch
        %286 = sbr.rel (%p284) target = $region44
      $region43: #{model_forward.1} parent=5 // pred_region
        // Predicated region
        $region45: #{model_forward.1} parent=43 // pred_check
          %p287 = pneg %p42
        $region46: #{model_forward.1} parent=43 // pred_check_branch
          %289 = sbr.rel (%p287) target = $region48
        $region47: #{model_forward.1} parent=43 // pred_region
          %s290 = sand.u32 %s32, 1
          %s291 = scalar_lea.sflag [#allocation3], %s290
          %s292 = sand.u32 %s32, 1
          %s293 = smul.addr %s292, 800
          %s294 = scalar_lea.vmem [#allocation2], %s293
          %296 = vsyncadd %s291, 0
          %s297 = smul.addr %s22, 100
          %s298 = smul.addr %s297, 8
          %s299 = scalar_lea.hbm %s0, %s298
          %s300 = sshll.u32 %s299, 4
          %s301 = int_to_ptr.hbm [resolvable:$true] %s300
          %s302 = sshll.u32 %s294, 4
          %s303 = int_to_ptr.vmem [resolvable:$true] %s302
          %308 = dma.hbm_to_vmem [thread:$0]  %s301, 12800, %s303, %s291, 256, 256, 16
        $region48: #{model_forward.1} parent=43 // pred_fallthru
          _
      $region44: #{model_forward.1} parent=5 // pred_fallthru
        _
      %p309 = scmp.le.s32.totalorder 1, %s22
      %p310 = scmp.lt.s32.totalorder %s22, 3
      %p311 = pnand %p309, %p310
      %p312 = pneg %p311
      // Predicated region
      $region49: #{model_forward.1} parent=5 // pred_check
        _
      $region50: #{model_forward.1} parent=5 // pred_check_branch
        %314 = sbr.rel (%p311) target = $region52
      $region51: #{model_forward.1} parent=5 // pred_region
        %s315 = ssub.s32 %s22, 1
        %s316 = sand.u32 %s35, 1
        %s317 = scalar_lea.sflag [#allocation3], %s316
        %s318 = sand.u32 %s35, 1
        %s319 = smul.addr %s318, 800
        %s320 = scalar_lea.vmem [#allocation2], %s319
        // Predicated region
        $region53: #{model_forward.1} parent=51 // pred_check
          %p321 = pneg %p48
        $region54: #{model_forward.1} parent=51 // pred_check_branch
          %323 = sbr.rel (%p321) target = $region56
        $region55: #{model_forward.1} parent=51 // pred_region
          %325 = dma.done %s317, 12800
        $region56: #{model_forward.1} parent=51 // pred_fallthru
          _
        %s326 = sand.u32 %s35, 1
        %s327 = scalar_lea.sflag [#allocation3], %s326
        %s328 = sand.u32 %s35, 1
        %s329 = smul.addr %s328, 800
        %s330 = scalar_lea.vmem [#allocation2], %s329
        %p331 = pneg %p48
        %p332 = pneg %p45
        %p333 = pneg %p69
        %p334 = pneg %p66
        %p335 = pneg %p90
        %p336 = pneg %p87
        %p337 = pneg %p111
        %p338 = pneg %p108
        %p339 = pneg %p132
        %p340 = pneg %p129
        %p341 = pneg %p153
        %p342 = pneg %p150
        %p343 = pneg %p174
        %p344 = pneg %p171
        %p345 = pneg %p195
        %p346 = pneg %p192
        %p347 = pneg %p221
        %p348 = pneg %p218
        %s349 = sand.u32 %s208, 1
        %s350 = scalar_lea.sflag [#allocation4], %s349
        %s351 = sand.u32 %s208, 1
        %s352 = scalar_lea.vmem [#allocation5], %s351
        %p353 = pneg %p247
        %p354 = pneg %p244
        %p355 = scmp.lt.s32.totalorder %s27, 1
        %s356 = scalar_select %p355, %s27, 1
        %s357 = smul.addr %s356, 8
        %s358 = scalar_lea.vmem %s9, %s357
        %p359 = scmp.lt.s32.totalorder %s27, 1
        %s360 = scalar_select %p359, %s27, 1
        %s361 = smul.addr %s360, 8
        %s362 = scalar_lea.vmem %s9, %s361
        %v363 = vld [vmem:[%s7] sm:$0xff]
        %v364 = vlaneseq
        %v365 = vshrl.u32 %v364, 7
        %v366 = vld [vmem:[%s320] sm:$0xff]
        %v367 = vld [vmem:[%s320 + $0x8] sm:$0xff]
        %v368 = vld [vmem:[%s320 + $0x10] sm:$0xff]
        %v369 = vld [vmem:[%s320 + $0x18] sm:$0xff]
        %v370 = vld [vmem:[%s320 + $0x20] sm:$0xff]
        %v371 = vld [vmem:[%s320 + $0x28] sm:$0xff]
        %v372 = vld [vmem:[%s320 + $0x30] sm:$0xff]
        %v373 = vld [vmem:[%s320 + $0x38] sm:$0xff]
        %v374 = vld [vmem:[%s320 + $0x40] sm:$0xff]
        %v375 = vld [vmem:[%s320 + $0x48] sm:$0xff]
        %v376 = vld [vmem:[%s320 + $0x50] sm:$0xff]
        %v377 = vld [vmem:[%s320 + $0x58] sm:$0xff]
        %v378 = vld [vmem:[%s320 + $0x60] sm:$0xff]
        %v379 = vld [vmem:[%s320 + $0x68] sm:$0xff]
        %v380 = vld [vmem:[%s320 + $0x70] sm:$0xff]
        %v381 = vld [vmem:[%s320 + $0x78] sm:$0xff]
        %v382 = vld [vmem:[%s320 + $0x80] sm:$0xff]
        %v383 = vld [vmem:[%s320 + $0x88] sm:$0xff]
        %v384 = vld [vmem:[%s320 + $0x90] sm:$0xff]
        %v385 = vld [vmem:[%s320 + $0x98] sm:$0xff]
        %v386 = vld [vmem:[%s320 + $0xa0] sm:$0xff]
        %v387 = vld [vmem:[%s320 + $0xa8] sm:$0xff]
        %v388 = vld [vmem:[%s320 + $0xb0] sm:$0xff]
        %v389 = vld [vmem:[%s320 + $0xb8] sm:$0xff]
        %v390 = vld [vmem:[%s320 + $0xc0] sm:$0xff]
        %v391 = vld [vmem:[%s320 + $0xc8] sm:$0xff]
        %v392 = vld [vmem:[%s320 + $0xd0] sm:$0xff]
        %v393 = vld [vmem:[%s320 + $0xd8] sm:$0xff]
        %v394 = vld [vmem:[%s320 + $0xe0] sm:$0xff]
        %v395 = vld [vmem:[%s320 + $0xe8] sm:$0xff]
        %v396 = vld [vmem:[%s320 + $0xf0] sm:$0xff]
        %v397 = vld [vmem:[%s320 + $0xf8] sm:$0xff]
        %v398 = vld [vmem:[%s320 + $0x100] sm:$0xff]
        %v399 = vld [vmem:[%s320 + $0x108] sm:$0xff]
        %v400 = vld [vmem:[%s320 + $0x110] sm:$0xff]
        %v401 = vld [vmem:[%s320 + $0x118] sm:$0xff]
        %v402 = vld [vmem:[%s320 + $0x120] sm:$0xff]
        %v403 = vld [vmem:[%s320 + $0x128] sm:$0xff]
        %v404 = vld [vmem:[%s320 + $0x130] sm:$0xff]
        %v405 = vld [vmem:[%s320 + $0x138] sm:$0xff]
        %v406 = vld [vmem:[%s320 + $0x140] sm:$0xff]
        %v407 = vld [vmem:[%s320 + $0x148] sm:$0xff]
        %v408 = vld [vmem:[%s320 + $0x150] sm:$0xff]
        %v409 = vld [vmem:[%s320 + $0x158] sm:$0xff]
        %v410 = vld [vmem:[%s320 + $0x160] sm:$0xff]
        %v411 = vld [vmem:[%s320 + $0x168] sm:$0xff]
        %v412 = vld [vmem:[%s320 + $0x170] sm:$0xff]
        %v413 = vld [vmem:[%s320 + $0x178] sm:$0xff]
        %v414 = vld [vmem:[%s320 + $0x180] sm:$0xff]
        %v415 = vld [vmem:[%s320 + $0x188] sm:$0xff]
        %v416 = vld [vmem:[%s1] sm:$0xff]
        %v417 = vld [vmem:[%s1 + $0x8] sm:$0xff]
        %v418 = vmax.f32 %v416, 0.0
        %v419 = vmax.f32 %v417, 0.0
        %v420 = vld [vmem:[%s2] sm:$0xff]
        %v421 = vld [vmem:[%s2 + $0x8] sm:$0xff]
        %v422 = vld [vmem:[%s2 + $0x10] sm:$0xff]
        %v423 = vld [vmem:[%s2 + $0x18] sm:$0xff]
        %v424 = vld [vmem:[%s2 + $0x20] sm:$0xff]
        %v425 = vld [vmem:[%s2 + $0x28] sm:$0xff]
        %v426 = vld [vmem:[%s2 + $0x30] sm:$0xff]
        %v427 = vld [vmem:[%s2 + $0x38] sm:$0xff]
        %v428 = vld [vmem:[%s2 + $0x40] sm:$0xff]
        %v429 = vld [vmem:[%s2 + $0x48] sm:$0xff]
        %v430 = vld [vmem:[%s2 + $0x50] sm:$0xff]
        %v431 = vld [vmem:[%s2 + $0x58] sm:$0xff]
        %v432 = vld [vmem:[%s2 + $0x60] sm:$0xff]
        %v433 = vld [vmem:[%s2 + $0x68] sm:$0xff]
        %v434 = vld [vmem:[%s2 + $0x70] sm:$0xff]
        %v435 = vld [vmem:[%s2 + $0x78] sm:$0xff]
        %v436 = vld [vmem:[%s2 + $0x80] sm:$0xff]
        %v437 = vld [vmem:[%s2 + $0x88] sm:$0xff]
        %v438 = vld [vmem:[%s2 + $0x90] sm:$0xff]
        %v439 = vld [vmem:[%s2 + $0x98] sm:$0xff]
        %v440 = vld [vmem:[%s2 + $0xa0] sm:$0xff]
        %v441 = vld [vmem:[%s2 + $0xa8] sm:$0xff]
        %v442 = vld [vmem:[%s2 + $0xb0] sm:$0xff]
        %v443 = vld [vmem:[%s2 + $0xb8] sm:$0xff]
        %v444 = vld [vmem:[%s2 + $0xc0] sm:$0xff]
        %v445 = vmax.f32 %v420, 0.0
        %v446 = vmax.f32 %v421, 0.0
        %v447 = vmax.f32 %v422, 0.0
        %v448 = vmax.f32 %v423, 0.0
        %v449 = vmax.f32 %v424, 0.0
        %v450 = vmax.f32 %v425, 0.0
        %v451 = vmax.f32 %v426, 0.0
        %v452 = vmax.f32 %v427, 0.0
        %v453 = vmax.f32 %v428, 0.0
        %v454 = vmax.f32 %v429, 0.0
        %v455 = vmax.f32 %v430, 0.0
        %v456 = vmax.f32 %v431, 0.0
        %v457 = vmax.f32 %v432, 0.0
        %v458 = vmax.f32 %v433, 0.0
        %v459 = vmax.f32 %v434, 0.0
        %v460 = vmax.f32 %v435, 0.0
        %v461 = vmax.f32 %v436, 0.0
        %v462 = vmax.f32 %v437, 0.0
        %v463 = vmax.f32 %v438, 0.0
        %v464 = vmax.f32 %v439, 0.0
        %v465 = vmax.f32 %v440, 0.0
        %v466 = vmax.f32 %v441, 0.0
        %v467 = vmax.f32 %v442, 0.0
        %v468 = vmax.f32 %v443, 0.0
        %v469 = vmax.f32 %v444, 0.0
        %vm470 = vcmask 588800
        %v472 = vsel %vm470, %v419, 0
        %474 = vmatpush.msra.mxu0 %v396
        %475 = vmatpush.msra.mxu0 %v394
        %476 = vmatpush.msra.mxu0 %v392
        %477 = vmatpush.msra.mxu0 %v390
        %478 = vmatpush.msra.mxu0 %v388
        %479 = vmatpush.msra.mxu0 %v386
        %480 = vmatpush.msra.mxu0 %v384
        %481 = vmatpush.msra.mxu0 %v382
        %482 = vmatpush.msra.mxu0 %v380
        %483 = vmatpush.msra.mxu0 %v378
        %484 = vmatpush.msra.mxu0 %v376
        %485 = vmatpush.msra.mxu0 %v374
        %486 = vmatpush.msra.mxu0 %v372
        %487 = vmatpush.msra.mxu0 %v370
        %488 = vmatpush.msra.mxu0 %v368
        %489 = vmatpush.msra.mxu0 %v366
        %490 = vmatmul.f32.gmra.mxu0 %v418
        %v491 = vpop.f32.mrf.mxu0
        %v492 = vadd.f32 0.0, %v491
        %493 = vdwg.mxu0
        %494 = vmatpush.msra.mxu0 0.0
        %495 = vmatpush.msra.mxu0 0.0
        %496 = vmatpush.msra.mxu0 0.0
        %497 = vmatpush.msra.mxu0 0.0
        %498 = vmatpush.msra.mxu0 0.0
        %499 = vmatpush.msra.mxu0 0.0
        %500 = vmatpush.msra.mxu0 0.0
        %501 = vmatpush.msra.mxu0 %v414
        %502 = vmatpush.msra.mxu0 %v412
        %503 = vmatpush.msra.mxu0 %v410
        %504 = vmatpush.msra.mxu0 %v408
        %505 = vmatpush.msra.mxu0 %v406
        %506 = vmatpush.msra.mxu0 %v404
        %507 = vmatpush.msra.mxu0 %v402
        %508 = vmatpush.msra.mxu0 %v400
        %509 = vmatpush.msra.mxu0 %v398
        %510 = vmatmul.f32.gmra.mxu0 %v472
        %v511 = vpop.f32.mrf.mxu0
        %v512 = vadd.f32 %v492, %v511
        %513 = vdwg.mxu0
        %514 = vmatpush.msra.mxu0 %v397
        %515 = vmatpush.msra.mxu0 %v395
        %516 = vmatpush.msra.mxu0 %v393
        %517 = vmatpush.msra.mxu0 %v391
        %518 = vmatpush.msra.mxu0 %v389
        %519 = vmatpush.msra.mxu0 %v387
        %520 = vmatpush.msra.mxu0 %v385
        %521 = vmatpush.msra.mxu0 %v383
        %522 = vmatpush.msra.mxu0 %v381
        %523 = vmatpush.msra.mxu0 %v379
        %524 = vmatpush.msra.mxu0 %v377
        %525 = vmatpush.msra.mxu0 %v375
        %526 = vmatpush.msra.mxu0 %v373
        %527 = vmatpush.msra.mxu0 %v371
        %528 = vmatpush.msra.mxu0 %v369
        %529 = vmatpush.msra.mxu0 %v367
        %530 = vmatmul.f32.gmra.mxu0 %v418
        %v531 = vpop.f32.mrf.mxu0
        %v532 = vadd.f32 0.0, %v531
        %533 = vdwg.mxu0
        %534 = vmatpush.msra.mxu0 0.0
        %535 = vmatpush.msra.mxu0 0.0
        %536 = vmatpush.msra.mxu0 0.0
        %537 = vmatpush.msra.mxu0 0.0
        %538 = vmatpush.msra.mxu0 0.0
        %539 = vmatpush.msra.mxu0 0.0
        %540 = vmatpush.msra.mxu0 0.0
        %541 = vmatpush.msra.mxu0 %v415
        %542 = vmatpush.msra.mxu0 %v413
        %543 = vmatpush.msra.mxu0 %v411
        %544 = vmatpush.msra.mxu0 %v409
        %545 = vmatpush.msra.mxu0 %v407
        %546 = vmatpush.msra.mxu0 %v405
        %547 = vmatpush.msra.mxu0 %v403
        %548 = vmatpush.msra.mxu0 %v401
        %549 = vmatpush.msra.mxu0 %v399
        %550 = vmatmul.f32.gmra.mxu0 %v472
        %v551 = vpop.f32.mrf.mxu0
        %v552 = vadd.f32 %v532, %v551
        %553 = vdwg.mxu0
        %v555 = vsel %vm470, %v552, 0
        %557 = vmatpush.msra.mxu0 %v460
        %558 = vmatpush.msra.mxu0 %v459
        %559 = vmatpush.msra.mxu0 %v458
        %560 = vmatpush.msra.mxu0 %v457
        %561 = vmatpush.msra.mxu0 %v456
        %562 = vmatpush.msra.mxu0 %v455
        %563 = vmatpush.msra.mxu0 %v454
        %564 = vmatpush.msra.mxu0 %v453
        %565 = vmatpush.msra.mxu0 %v452
        %566 = vmatpush.msra.mxu0 %v451
        %567 = vmatpush.msra.mxu0 %v450
        %568 = vmatpush.msra.mxu0 %v449
        %569 = vmatpush.msra.mxu0 %v448
        %570 = vmatpush.msra.mxu0 %v447
        %571 = vmatpush.msra.mxu0 %v446
        %572 = vmatpush.msra.mxu0 %v445
        %573 = vmatmul.f32.gmra.mxu0 %v512
        %v574 = vpop.f32.mrf.mxu0
        %v575 = vadd.f32 0.0, %v574
        %576 = vdwg.mxu0
        %577 = vmatpush.msra.mxu0 0.0
        %578 = vmatpush.msra.mxu0 0.0
        %579 = vmatpush.msra.mxu0 0.0
        %580 = vmatpush.msra.mxu0 0.0
        %581 = vmatpush.msra.mxu0 0.0
        %582 = vmatpush.msra.mxu0 0.0
        %583 = vmatpush.msra.mxu0 0.0
        %584 = vmatpush.msra.mxu0 %v469
        %585 = vmatpush.msra.mxu0 %v468
        %586 = vmatpush.msra.mxu0 %v467
        %587 = vmatpush.msra.mxu0 %v466
        %588 = vmatpush.msra.mxu0 %v465
        %589 = vmatpush.msra.mxu0 %v464
        %590 = vmatpush.msra.mxu0 %v463
        %591 = vmatpush.msra.mxu0 %v462
        %592 = vmatpush.msra.mxu0 %v461
        %593 = vmatmul.f32.gmra.mxu0 %v555
        %v594 = vpop.f32.mrf.mxu0
        %v595 = vadd.f32 %v575, %v594
        %596 = vdwg.mxu0
        %vm597 = vcmask 64512
        %598 = vst.msk [vmem:[%s362] sm:$0xff] %vm597, %v595
        %v599 = vld [vmem:[%s3] sm:$0xff]
        %v601 = vsel %vm597, %v595, 0
        %603 = vmatpush.msra.mxu0 0.0
        %604 = vmatpush.msra.mxu0 0.0
        %605 = vmatpush.msra.mxu0 0.0
        %606 = vmatpush.msra.mxu0 0.0
        %607 = vmatpush.msra.mxu0 0.0
        %608 = vmatpush.msra.mxu0 0.0
        %609 = vmatpush.msra.mxu0 0.0
        %610 = vmatpush.msra.mxu0 0.0
        %611 = vmatpush.msra.mxu0 0.0
        %612 = vmatpush.msra.mxu0 0.0
        %613 = vmatpush.msra.mxu0 0.0
        %614 = vmatpush.msra.mxu0 0.0
        %615 = vmatpush.msra.mxu0 0.0
        %616 = vmatpush.msra.mxu0 0.0
        %617 = vmatpush.msra.mxu0 0.0
        %618 = vmatpush.msra.mxu0 %v599
        %619 = vmatmul.f32.gmra.mxu0 %v601
        %v620 = vpop.f32.mrf.mxu0
        %v621 = vadd.f32 0.0, %v620
        %622 = vdwg.mxu0
        %v623 = vmul.f32 %v621, 0.85
        %v624 = vadd.f32 %v363, %v623
        %v625 = vmax.f32 %v624, 0.0
        %v626 = vsel %vm597, %v625, 0.0
        %v627 = vrot.slane %v626, 4
        %v628 = vadd.f32 %v626, %v627
        %v629 = vrot.slane %v628, 2
        %v630 = vadd.f32 %v628, %v629
        %v631 = vrot.slane %v630, 1
        %v632 = vadd.f32 %v630, %v631
        %v633 = vrcp.pop 8.0
        %v634 = vmul.f32 8.0, %v633
        %v635 = vsub.f32 1.0, %v634
        %v636 = vmul.f32 %v633, %v635
        %v637 = vadd.f32 %v633, %v636
        %vm638 = vweird.f32 %v633
        %v639 = vsel %vm638, %v633, %v637
        %v640 = vmul.f32 %v632, %v639
        %v641 = vadd.f32 %v640, 1e-06
        %v642 = vrcp.pop %v641
        %v643 = vmul.f32 %v641, %v642
        %v644 = vsub.f32 1.0, %v643
        %v645 = vmul.f32 %v642, %v644
        %v646 = vadd.f32 %v642, %v645
        %vm647 = vweird.f32 %v641
        %vm648 = vweird.f32 %v642
        %vm649 = vmor %vm647, %vm648
        %v650 = vsel %vm649, %v642, %v646
        %v651 = vand.u32 2147483647, %v641
        %vm652 = vcmp.eq.f32.partialorder %v651, 8.507059e+37
        %v653 = vand.u32 %v641, 2147483648
        %v654 = vor.u32 1.1754944e-38, %v653
        %v655 = vsel %vm652, %v654, %v650
        %v656 = vmul.f32 %v625, %v655
        %v657 = vmax.f32 %v656, 0.0
        %v658 = vand.u32 2147483647, %v656
        %v659 = vsub.f32 0.0, %v658
        %v660 = vmul.f32 %v659, 1.442695
        %v661 = vpow.pop %v660
        %v662 = vadd.f32 %v661, 1.0
        %v663 = vlog2.pop %v662
        %v664 = vmul.f32 %v663, 0.6931472
        %v665 = vadd.f32 %v657, %v664
        %s666 = scalar_lea.vmem %s3, 8
        %v667 = vld [vmem:[%s666] sm:$0xff]
        %v669 = vsel %vm597, %v665, 0
        %671 = vmatpush.msra.mxu0 0.0
        %672 = vmatpush.msra.mxu0 0.0
        %673 = vmatpush.msra.mxu0 0.0
        %674 = vmatpush.msra.mxu0 0.0
        %675 = vmatpush.msra.mxu0 0.0
        %676 = vmatpush.msra.mxu0 0.0
        %677 = vmatpush.msra.mxu0 0.0
        %678 = vmatpush.msra.mxu0 0.0
        %679 = vmatpush.msra.mxu0 0.0
        %680 = vmatpush.msra.mxu0 0.0
        %681 = vmatpush.msra.mxu0 0.0
        %682 = vmatpush.msra.mxu0 0.0
        %683 = vmatpush.msra.mxu0 0.0
        %684 = vmatpush.msra.mxu0 0.0
        %685 = vmatpush.msra.mxu0 0.0
        %686 = vmatpush.msra.mxu0 %v667
        %687 = vmatmul.f32.gmra.mxu0 %v669
        %v688 = vpop.f32.mrf.mxu0
        %v689 = vadd.f32 0.0, %v688
        %690 = vdwg.mxu0
        %691 = vmatpush.msra.mxu0 0.0
        %692 = vmatpush.msra.mxu0 0.0
        %693 = vmatpush.msra.mxu0 0.0
        %694 = vmatpush.msra.mxu0 0.0
        %695 = vmatpush.msra.mxu0 0.0
        %696 = vmatpush.msra.mxu0 0.0
        %697 = vmatpush.msra.mxu0 0.0
        %698 = vmatpush.msra.mxu0 0.0
        %699 = vmatpush.msra.mxu0 0.0
        %700 = vmatpush.msra.mxu0 0.0
        %701 = vmatpush.msra.mxu0 0.0
        %702 = vmatpush.msra.mxu0 0.0
        %703 = vmatpush.msra.mxu0 0.0
        %704 = vmatpush.msra.mxu0 0.0
        %705 = vmatpush.msra.mxu0 0.0
        %706 = vmatpush.msra.mxu0 %v689
        %707 = vmatmul.f32.gmra.mxu0 %v601
        %v708 = vpop.f32.mrf.mxu0
        %v709 = vadd.f32 0.0, %v708
        %710 = vdwg.mxu0
        %v711 = vmul.f32 %v709, 0.85
        %v712 = vadd.f32 %v363, %v711
        %v713 = vmax.f32 %v712, 0.0
        %v714 = vsel %vm597, %v713, 0.0
        %v715 = vrot.slane %v714, 4
        %v716 = vadd.f32 %v714, %v715
        %v717 = vrot.slane %v716, 2
        %v718 = vadd.f32 %v716, %v717
        %v719 = vrot.slane %v718, 1
        %v720 = vadd.f32 %v718, %v719
        %v721 = vmul.f32 %v720, %v639
        %v722 = vadd.f32 %v721, 1e-06
        %v723 = vrcp.pop %v722
        %v724 = vmul.f32 %v722, %v723
        %v725 = vsub.f32 1.0, %v724
        %v726 = vmul.f32 %v723, %v725
        %v727 = vadd.f32 %v723, %v726
        %vm728 = vweird.f32 %v722
        %vm729 = vweird.f32 %v723
        %vm730 = vmor %vm728, %vm729
        %v731 = vsel %vm730, %v723, %v727
        %v732 = vand.u32 2147483647, %v722
        %vm733 = vcmp.eq.f32.partialorder %v732, 8.507059e+37
        %v734 = vand.u32 %v722, 2147483648
        %v735 = vor.u32 1.1754944e-38, %v734
        %v736 = vsel %vm733, %v735, %v731
        %v737 = vmul.f32 %v713, %v736
        %v738 = vmax.f32 %v737, 0.0
        %v739 = vand.u32 2147483647, %v737
        %v740 = vsub.f32 0.0, %v739
        %v741 = vmul.f32 %v740, 1.442695
        %v742 = vpow.pop %v741
        %v743 = vadd.f32 %v742, 1.0
        %v744 = vlog2.pop %v743
        %v745 = vmul.f32 %v744, 0.6931472
        %v746 = vadd.f32 %v738, %v745
        %s747 = scalar_lea.vmem %s3, 16
        %v748 = vld [vmem:[%s747] sm:$0xff]
        %v750 = vsel %vm597, %v746, 0
        %752 = vmatpush.msra.mxu0 0.0
        %753 = vmatpush.msra.mxu0 0.0
        %754 = vmatpush.msra.mxu0 0.0
        %755 = vmatpush.msra.mxu0 0.0
        %756 = vmatpush.msra.mxu0 0.0
        %757 = vmatpush.msra.mxu0 0.0
        %758 = vmatpush.msra.mxu0 0.0
        %759 = vmatpush.msra.mxu0 0.0
        %760 = vmatpush.msra.mxu0 0.0
        %761 = vmatpush.msra.mxu0 0.0
        %762 = vmatpush.msra.mxu0 0.0
        %763 = vmatpush.msra.mxu0 0.0
        %764 = vmatpush.msra.mxu0 0.0
        %765 = vmatpush.msra.mxu0 0.0
        %766 = vmatpush.msra.mxu0 0.0
        %767 = vmatpush.msra.mxu0 %v748
        %768 = vmatmul.f32.gmra.mxu0 %v750
        %v769 = vpop.f32.mrf.mxu0
        %v770 = vadd.f32 0.0, %v769
        %771 = vdwg.mxu0
        %772 = vmatpush.msra.mxu0 0.0
        %773 = vmatpush.msra.mxu0 0.0
        %774 = vmatpush.msra.mxu0 0.0
        %775 = vmatpush.msra.mxu0 0.0
        %776 = vmatpush.msra.mxu0 0.0
        %777 = vmatpush.msra.mxu0 0.0
        %778 = vmatpush.msra.mxu0 0.0
        %779 = vmatpush.msra.mxu0 0.0
        %780 = vmatpush.msra.mxu0 0.0
        %781 = vmatpush.msra.mxu0 0.0
        %782 = vmatpush.msra.mxu0 0.0
        %783 = vmatpush.msra.mxu0 0.0
        %784 = vmatpush.msra.mxu0 0.0
        %785 = vmatpush.msra.mxu0 0.0
        %786 = vmatpush.msra.mxu0 0.0
        %787 = vmatpush.msra.mxu0 %v770
        %788 = vmatmul.f32.gmra.mxu0 %v601
        %v789 = vpop.f32.mrf.mxu0
        %v790 = vadd.f32 0.0, %v789
        %791 = vdwg.mxu0
        %v792 = vmul.f32 %v790, 0.85
        %v793 = vadd.f32 %v363, %v792
        %v794 = vmax.f32 %v793, 0.0
        %v795 = vsel %vm597, %v794, 0.0
        %v796 = vrot.slane %v795, 4
        %v797 = vadd.f32 %v795, %v796
        %v798 = vrot.slane %v797, 2
        %v799 = vadd.f32 %v797, %v798
        %v800 = vrot.slane %v799, 1
        %v801 = vadd.f32 %v799, %v800
        %v802 = vmul.f32 %v801, %v639
        %v803 = vadd.f32 %v802, 1e-06
        %v804 = vrcp.pop %v803
        %v805 = vmul.f32 %v803, %v804
        %v806 = vsub.f32 1.0, %v805
        %v807 = vmul.f32 %v804, %v806
        %v808 = vadd.f32 %v804, %v807
        %vm809 = vweird.f32 %v803
        %vm810 = vweird.f32 %v804
        %vm811 = vmor %vm809, %vm810
        %v812 = vsel %vm811, %v804, %v808
        %v813 = vand.u32 2147483647, %v803
        %vm814 = vcmp.eq.f32.partialorder %v813, 8.507059e+37
        %v815 = vand.u32 %v803, 2147483648
        %v816 = vor.u32 1.1754944e-38, %v815
        %v817 = vsel %vm814, %v816, %v812
        %v818 = vmul.f32 %v794, %v817
        %v819 = vmax.f32 %v818, 0.0
        %v820 = vand.u32 2147483647, %v818
        %v821 = vsub.f32 0.0, %v820
        %v822 = vmul.f32 %v821, 1.442695
        %v823 = vpow.pop %v822
        %v824 = vadd.f32 %v823, 1.0
        %v825 = vlog2.pop %v824
        %v826 = vmul.f32 %v825, 0.6931472
        %v827 = vadd.f32 %v819, %v826
        %v828 = vld [vmem:[%s4] sm:$0xff]
        %v829 = vld [vmem:[%s4 + $0x8] sm:$0xff]
        %v830 = vld [vmem:[%s4 + $0x10] sm:$0xff]
        %v831 = vld [vmem:[%s4 + $0x18] sm:$0xff]
        %v832 = vld [vmem:[%s4 + $0x20] sm:$0xff]
        %v833 = vld [vmem:[%s4 + $0x28] sm:$0xff]
        %v834 = vld [vmem:[%s4 + $0x30] sm:$0xff]
        %v835 = vld [vmem:[%s4 + $0x38] sm:$0xff]
        %vm836 = vcmp.eq.s32.totalorder %v365, 0
        %v837 = vsel %vm836, %v827, 0.0
        %vm838 = vcmp.eq.s32.totalorder %v365, 1
        %v839 = vsel %vm838, %v827, 0.0
        %v841 = vsel %vm597, %v839, 0
        %843 = vmatpush.msra.mxu0 0.0
        %844 = vmatpush.msra.mxu0 0.0
        %845 = vmatpush.msra.mxu0 0.0
        %846 = vmatpush.msra.mxu0 0.0
        %847 = vmatpush.msra.mxu0 0.0
        %848 = vmatpush.msra.mxu0 0.0
        %849 = vmatpush.msra.mxu0 0.0
        %850 = vmatpush.msra.mxu0 0.0
        %851 = vmatpush.msra.mxu0 0.0
        %852 = vmatpush.msra.mxu0 0.0
        %853 = vmatpush.msra.mxu0 0.0
        %854 = vmatpush.msra.mxu0 0.0
        %855 = vmatpush.msra.mxu0 0.0
        %856 = vmatpush.msra.mxu0 0.0
        %857 = vmatpush.msra.mxu0 0.0
        %858 = vmatpush.msra.mxu0 %v829
        %859 = vmatmul.f32.gmra.mxu0 %v841
        %v860 = vpop.f32.mrf.mxu0
        %v861 = vadd.f32 0.0, %v860
        %862 = vdwg.mxu0
        %v864 = vsel %vm597, %v837, 0
        %866 = vmatpush.msra.mxu0 0.0
        %867 = vmatpush.msra.mxu0 0.0
        %868 = vmatpush.msra.mxu0 0.0
        %869 = vmatpush.msra.mxu0 0.0
        %870 = vmatpush.msra.mxu0 0.0
        %871 = vmatpush.msra.mxu0 0.0
        %872 = vmatpush.msra.mxu0 0.0
        %873 = vmatpush.msra.mxu0 0.0
        %874 = vmatpush.msra.mxu0 0.0
        %875 = vmatpush.msra.mxu0 0.0
        %876 = vmatpush.msra.mxu0 0.0
        %877 = vmatpush.msra.mxu0 0.0
        %878 = vmatpush.msra.mxu0 0.0
        %879 = vmatpush.msra.mxu0 0.0
        %880 = vmatpush.msra.mxu0 0.0
        %881 = vmatpush.msra.mxu0 %v828
        %882 = vmatmul.f32.gmra.mxu0 %v864
        %v883 = vpop.f32.mrf.mxu0
        %v884 = vadd.f32 %v861, %v883
        %885 = vdwg.mxu0
        %vm886 = vcmp.eq.s32.totalorder %v365, 2
        %v887 = vsel %vm886, %v827, 0.0
        %v889 = vsel %vm597, %v887, 0
        %891 = vmatpush.msra.mxu0 0.0
        %892 = vmatpush.msra.mxu0 0.0
        %893 = vmatpush.msra.mxu0 0.0
        %894 = vmatpush.msra.mxu0 0.0
        %895 = vmatpush.msra.mxu0 0.0
        %896 = vmatpush.msra.mxu0 0.0
        %897 = vmatpush.msra.mxu0 0.0
        %898 = vmatpush.msra.mxu0 0.0
        %899 = vmatpush.msra.mxu0 0.0
        %900 = vmatpush.msra.mxu0 0.0
        %901 = vmatpush.msra.mxu0 0.0
        %902 = vmatpush.msra.mxu0 0.0
        %903 = vmatpush.msra.mxu0 0.0
        %904 = vmatpush.msra.mxu0 0.0
        %905 = vmatpush.msra.mxu0 0.0
        %906 = vmatpush.msra.mxu0 %v830
        %907 = vmatmul.f32.gmra.mxu0 %v889
        %v908 = vpop.f32.mrf.mxu0
        %v909 = vadd.f32 0.0, %v908
        %910 = vdwg.mxu0
        %v911 = vadd.f32 %v884, %v909
        %vm912 = vcmp.eq.s32.totalorder %v365, 3
        %v913 = vsel %vm912, %v827, 0.0
        %v915 = vsel %vm597, %v913, 0
        %917 = vmatpush.msra.mxu0 0.0
        %918 = vmatpush.msra.mxu0 0.0
        %919 = vmatpush.msra.mxu0 0.0
        %920 = vmatpush.msra.mxu0 0.0
        %921 = vmatpush.msra.mxu0 0.0
        %922 = vmatpush.msra.mxu0 0.0
        %923 = vmatpush.msra.mxu0 0.0
        %924 = vmatpush.msra.mxu0 0.0
        %925 = vmatpush.msra.mxu0 0.0
        %926 = vmatpush.msra.mxu0 0.0
        %927 = vmatpush.msra.mxu0 0.0
        %928 = vmatpush.msra.mxu0 0.0
        %929 = vmatpush.msra.mxu0 0.0
        %930 = vmatpush.msra.mxu0 0.0
        %931 = vmatpush.msra.mxu0 0.0
        %932 = vmatpush.msra.mxu0 %v831
        %933 = vmatmul.f32.gmra.mxu0 %v915
        %v934 = vpop.f32.mrf.mxu0
        %v935 = vadd.f32 0.0, %v934
        %936 = vdwg.mxu0
        %v937 = vadd.f32 %v911, %v935
        %vm938 = vcmp.eq.s32.totalorder %v365, 4
        %v939 = vsel %vm938, %v827, 0.0
        %v941 = vsel %vm597, %v939, 0
        %943 = vmatpush.msra.mxu0 0.0
        %944 = vmatpush.msra.mxu0 0.0
        %945 = vmatpush.msra.mxu0 0.0
        %946 = vmatpush.msra.mxu0 0.0
        %947 = vmatpush.msra.mxu0 0.0
        %948 = vmatpush.msra.mxu0 0.0
        %949 = vmatpush.msra.mxu0 0.0
        %950 = vmatpush.msra.mxu0 0.0
        %951 = vmatpush.msra.mxu0 0.0
        %952 = vmatpush.msra.mxu0 0.0
        %953 = vmatpush.msra.mxu0 0.0
        %954 = vmatpush.msra.mxu0 0.0
        %955 = vmatpush.msra.mxu0 0.0
        %956 = vmatpush.msra.mxu0 0.0
        %957 = vmatpush.msra.mxu0 0.0
        %958 = vmatpush.msra.mxu0 %v832
        %959 = vmatmul.f32.gmra.mxu0 %v941
        %v960 = vpop.f32.mrf.mxu0
        %v961 = vadd.f32 0.0, %v960
        %962 = vdwg.mxu0
        %v963 = vadd.f32 %v937, %v961
        %vm964 = vcmp.eq.s32.totalorder %v365, 5
        %v965 = vsel %vm964, %v827, 0.0
        %v967 = vsel %vm597, %v965, 0
        %969 = vmatpush.msra.mxu0 0.0
        %970 = vmatpush.msra.mxu0 0.0
        %971 = vmatpush.msra.mxu0 0.0
        %972 = vmatpush.msra.mxu0 0.0
        %973 = vmatpush.msra.mxu0 0.0
        %974 = vmatpush.msra.mxu0 0.0
        %975 = vmatpush.msra.mxu0 0.0
        %976 = vmatpush.msra.mxu0 0.0
        %977 = vmatpush.msra.mxu0 0.0
        %978 = vmatpush.msra.mxu0 0.0
        %979 = vmatpush.msra.mxu0 0.0
        %980 = vmatpush.msra.mxu0 0.0
        %981 = vmatpush.msra.mxu0 0.0
        %982 = vmatpush.msra.mxu0 0.0
        %983 = vmatpush.msra.mxu0 0.0
        %984 = vmatpush.msra.mxu0 %v833
        %985 = vmatmul.f32.gmra.mxu0 %v967
        %v986 = vpop.f32.mrf.mxu0
        %v987 = vadd.f32 0.0, %v986
        %988 = vdwg.mxu0
        %v989 = vadd.f32 %v963, %v987
        %vm990 = vcmp.eq.s32.totalorder %v365, 6
        %v991 = vsel %vm990, %v827, 0.0
        %v993 = vsel %vm597, %v991, 0
        %995 = vmatpush.msra.mxu0 0.0
        %996 = vmatpush.msra.mxu0 0.0
        %997 = vmatpush.msra.mxu0 0.0
        %998 = vmatpush.msra.mxu0 0.0
        %999 = vmatpush.msra.mxu0 0.0
        %1000 = vmatpush.msra.mxu0 0.0
        %1001 = vmatpush.msra.mxu0 0.0
        %1002 = vmatpush.msra.mxu0 0.0
        %1003 = vmatpush.msra.mxu0 0.0
        %1004 = vmatpush.msra.mxu0 0.0
        %1005 = vmatpush.msra.mxu0 0.0
        %1006 = vmatpush.msra.mxu0 0.0
        %1007 = vmatpush.msra.mxu0 0.0
        %1008 = vmatpush.msra.mxu0 0.0
        %1009 = vmatpush.msra.mxu0 0.0
        %1010 = vmatpush.msra.mxu0 %v834
        %1011 = vmatmul.f32.gmra.mxu0 %v993
        %v1012 = vpop.f32.mrf.mxu0
        %v1013 = vadd.f32 0.0, %v1012
        %1014 = vdwg.mxu0
        %v1015 = vadd.f32 %v989, %v1013
        %vm1016 = vcmp.eq.s32.totalorder %v365, 7
        %v1017 = vsel %vm1016, %v827, 0.0
        %v1019 = vsel %vm597, %v1017, 0
        %1021 = vmatpush.msra.mxu0 0.0
        %1022 = vmatpush.msra.mxu0 0.0
        %1023 = vmatpush.msra.mxu0 0.0
        %1024 = vmatpush.msra.mxu0 0.0
        %1025 = vmatpush.msra.mxu0 0.0
        %1026 = vmatpush.msra.mxu0 0.0
        %1027 = vmatpush.msra.mxu0 0.0
        %1028 = vmatpush.msra.mxu0 0.0
        %1029 = vmatpush.msra.mxu0 0.0
        %1030 = vmatpush.msra.mxu0 0.0
        %1031 = vmatpush.msra.mxu0 0.0
        %1032 = vmatpush.msra.mxu0 0.0
        %1033 = vmatpush.msra.mxu0 0.0
        %1034 = vmatpush.msra.mxu0 0.0
        %1035 = vmatpush.msra.mxu0 0.0
        %1036 = vmatpush.msra.mxu0 %v835
        %1037 = vmatmul.f32.gmra.mxu0 %v1019
        %v1038 = vpop.f32.mrf.mxu0
        %v1039 = vadd.f32 0.0, %v1038
        %1040 = vdwg.mxu0
        %v1041 = vadd.f32 %v1015, %v1039
        %s1042 = scalar_lea.vmem %s320, 400 [#allocation2]
        %v1043 = vld [vmem:[%s1042] sm:$0xff]
        %v1044 = vld [vmem:[%s1042 + $0x8] sm:$0xff]
        %v1045 = vld [vmem:[%s1042 + $0x10] sm:$0xff]
        %v1046 = vld [vmem:[%s1042 + $0x18] sm:$0xff]
        %v1047 = vld [vmem:[%s1042 + $0x20] sm:$0xff]
        %v1048 = vld [vmem:[%s1042 + $0x28] sm:$0xff]
        %v1049 = vld [vmem:[%s1042 + $0x30] sm:$0xff]
        %v1050 = vld [vmem:[%s1042 + $0x38] sm:$0xff]
        %v1051 = vld [vmem:[%s1042 + $0x40] sm:$0xff]
        %v1052 = vld [vmem:[%s1042 + $0x48] sm:$0xff]
        %v1053 = vld [vmem:[%s1042 + $0x50] sm:$0xff]
        %v1054 = vld [vmem:[%s1042 + $0x58] sm:$0xff]
        %v1055 = vld [vmem:[%s1042 + $0x60] sm:$0xff]
        %v1056 = vld [vmem:[%s1042 + $0x68] sm:$0xff]
        %v1057 = vld [vmem:[%s1042 + $0x70] sm:$0xff]
        %v1058 = vld [vmem:[%s1042 + $0x78] sm:$0xff]
        %v1059 = vld [vmem:[%s1042 + $0x80] sm:$0xff]
        %v1060 = vld [vmem:[%s1042 + $0x88] sm:$0xff]
        %v1061 = vld [vmem:[%s1042 + $0x90] sm:$0xff]
        %v1062 = vld [vmem:[%s1042 + $0x98] sm:$0xff]
        %v1063 = vld [vmem:[%s1042 + $0xa0] sm:$0xff]
        %v1064 = vld [vmem:[%s1042 + $0xa8] sm:$0xff]
        %v1065 = vld [vmem:[%s1042 + $0xb0] sm:$0xff]
        %v1066 = vld [vmem:[%s1042 + $0xb8] sm:$0xff]
        %v1067 = vld [vmem:[%s1042 + $0xc0] sm:$0xff]
        %v1068 = vld [vmem:[%s1042 + $0xc8] sm:$0xff]
        %v1069 = vld [vmem:[%s1042 + $0xd0] sm:$0xff]
        %v1070 = vld [vmem:[%s1042 + $0xd8] sm:$0xff]
        %v1071 = vld [vmem:[%s1042 + $0xe0] sm:$0xff]
        %v1072 = vld [vmem:[%s1042 + $0xe8] sm:$0xff]
        %v1073 = vld [vmem:[%s1042 + $0xf0] sm:$0xff]
        %v1074 = vld [vmem:[%s1042 + $0xf8] sm:$0xff]
        %v1075 = vld [vmem:[%s1042 + $0x100] sm:$0xff]
        %v1076 = vld [vmem:[%s1042 + $0x108] sm:$0xff]
        %v1077 = vld [vmem:[%s1042 + $0x110] sm:$0xff]
        %v1078 = vld [vmem:[%s1042 + $0x118] sm:$0xff]
        %v1079 = vld [vmem:[%s1042 + $0x120] sm:$0xff]
        %v1080 = vld [vmem:[%s1042 + $0x128] sm:$0xff]
        %v1081 = vld [vmem:[%s1042 + $0x130] sm:$0xff]
        %v1082 = vld [vmem:[%s1042 + $0x138] sm:$0xff]
        %v1083 = vld [vmem:[%s1042 + $0x140] sm:$0xff]
        %v1084 = vld [vmem:[%s1042 + $0x148] sm:$0xff]
        %v1085 = vld [vmem:[%s1042 + $0x150] sm:$0xff]
        %v1086 = vld [vmem:[%s1042 + $0x158] sm:$0xff]
        %v1087 = vld [vmem:[%s1042 + $0x160] sm:$0xff]
        %v1088 = vld [vmem:[%s1042 + $0x168] sm:$0xff]
        %v1089 = vld [vmem:[%s1042 + $0x170] sm:$0xff]
        %v1090 = vld [vmem:[%s1042 + $0x178] sm:$0xff]
        %v1091 = vld [vmem:[%s1042 + $0x180] sm:$0xff]
        %v1092 = vld [vmem:[%s1042 + $0x188] sm:$0xff]
        %s1093 = scalar_lea.vmem %s1, 16
        %v1094 = vld [vmem:[%s1093] sm:$0xff]
        %v1095 = vld [vmem:[%s1093 + $0x8] sm:$0xff]
        %v1096 = vmax.f32 %v1094, 0.0
        %v1097 = vmax.f32 %v1095, 0.0
        %s1098 = scalar_lea.vmem %s2, 200
        %v1099 = vld [vmem:[%s1098] sm:$0xff]
        %v1100 = vld [vmem:[%s1098 + $0x8] sm:$0xff]
        %v1101 = vld [vmem:[%s1098 + $0x10] sm:$0xff]
        %v1102 = vld [vmem:[%s1098 + $0x18] sm:$0xff]
        %v1103 = vld [vmem:[%s1098 + $0x20] sm:$0xff]
        %v1104 = vld [vmem:[%s1098 + $0x28] sm:$0xff]
        %v1105 = vld [vmem:[%s1098 + $0x30] sm:$0xff]
        %v1106 = vld [vmem:[%s1098 + $0x38] sm:$0xff]
        %v1107 = vld [vmem:[%s1098 + $0x40] sm:$0xff]
        %v1108 = vld [vmem:[%s1098 + $0x48] sm:$0xff]
        %v1109 = vld [vmem:[%s1098 + $0x50] sm:$0xff]
        %v1110 = vld [vmem:[%s1098 + $0x58] sm:$0xff]
        %v1111 = vld [vmem:[%s1098 + $0x60] sm:$0xff]
        %v1112 = vld [vmem:[%s1098 + $0x68] sm:$0xff]
        %v1113 = vld [vmem:[%s1098 + $0x70] sm:$0xff]
        %v1114 = vld [vmem:[%s1098 + $0x78] sm:$0xff]
        %v1115 = vld [vmem:[%s1098 + $0x80] sm:$0xff]
        %v1116 = vld [vmem:[%s1098 + $0x88] sm:$0xff]
        %v1117 = vld [vmem:[%s1098 + $0x90] sm:$0xff]
        %v1118 = vld [vmem:[%s1098 + $0x98] sm:$0xff]
        %v1119 = vld [vmem:[%s1098 + $0xa0] sm:$0xff]
        %v1120 = vld [vmem:[%s1098 + $0xa8] sm:$0xff]
        %v1121 = vld [vmem:[%s1098 + $0xb0] sm:$0xff]
        %v1122 = vld [vmem:[%s1098 + $0xb8] sm:$0xff]
        %v1123 = vld [vmem:[%s1098 + $0xc0] sm:$0xff]
        %v1124 = vmax.f32 %v1099, 0.0
        %v1125 = vmax.f32 %v1100, 0.0
        %v1126 = vmax.f32 %v1101, 0.0
        %v1127 = vmax.f32 %v1102, 0.0
        %v1128 = vmax.f32 %v1103, 0.0
        %v1129 = vmax.f32 %v1104, 0.0
        %v1130 = vmax.f32 %v1105, 0.0
        %v1131 = vmax.f32 %v1106, 0.0
        %v1132 = vmax.f32 %v1107, 0.0
        %v1133 = vmax.f32 %v1108, 0.0
        %v1134 = vmax.f32 %v1109, 0.0
        %v1135 = vmax.f32 %v1110, 0.0
        %v1136 = vmax.f32 %v1111, 0.0
        %v1137 = vmax.f32 %v1112, 0.0
        %v1138 = vmax.f32 %v1113, 0.0
        %v1139 = vmax.f32 %v1114, 0.0
        %v1140 = vmax.f32 %v1115, 0.0
        %v1141 = vmax.f32 %v1116, 0.0
        %v1142 = vmax.f32 %v1117, 0.0
        %v1143 = vmax.f32 %v1118, 0.0
        %v1144 = vmax.f32 %v1119, 0.0
        %v1145 = vmax.f32 %v1120, 0.0
        %v1146 = vmax.f32 %v1121, 0.0
        %v1147 = vmax.f32 %v1122, 0.0
        %v1148 = vmax.f32 %v1123, 0.0
        %v1150 = vsel %vm470, %v1097, 0
        %1152 = vmatpush.msra.mxu0 %v1073
        %1153 = vmatpush.msra.mxu0 %v1071
        %1154 = vmatpush.msra.mxu0 %v1069
        %1155 = vmatpush.msra.mxu0 %v1067
        %1156 = vmatpush.msra.mxu0 %v1065
        %1157 = vmatpush.msra.mxu0 %v1063
        %1158 = vmatpush.msra.mxu0 %v1061
        %1159 = vmatpush.msra.mxu0 %v1059
        %1160 = vmatpush.msra.mxu0 %v1057
        %1161 = vmatpush.msra.mxu0 %v1055
        %1162 = vmatpush.msra.mxu0 %v1053
        %1163 = vmatpush.msra.mxu0 %v1051
        %1164 = vmatpush.msra.mxu0 %v1049
        %1165 = vmatpush.msra.mxu0 %v1047
        %1166 = vmatpush.msra.mxu0 %v1045
        %1167 = vmatpush.msra.mxu0 %v1043
        %1168 = vmatmul.f32.gmra.mxu0 %v1096
        %v1169 = vpop.f32.mrf.mxu0
        %v1170 = vadd.f32 0.0, %v1169
        %1171 = vdwg.mxu0
        %1172 = vmatpush.msra.mxu0 0.0
        %1173 = vmatpush.msra.mxu0 0.0
        %1174 = vmatpush.msra.mxu0 0.0
        %1175 = vmatpush.msra.mxu0 0.0
        %1176 = vmatpush.msra.mxu0 0.0
        %1177 = vmatpush.msra.mxu0 0.0
        %1178 = vmatpush.msra.mxu0 0.0
        %1179 = vmatpush.msra.mxu0 %v1091
        %1180 = vmatpush.msra.mxu0 %v1089
        %1181 = vmatpush.msra.mxu0 %v1087
        %1182 = vmatpush.msra.mxu0 %v1085
        %1183 = vmatpush.msra.mxu0 %v1083
        %1184 = vmatpush.msra.mxu0 %v1081
        %1185 = vmatpush.msra.mxu0 %v1079
        %1186 = vmatpush.msra.mxu0 %v1077
        %1187 = vmatpush.msra.mxu0 %v1075
        %1188 = vmatmul.f32.gmra.mxu0 %v1150
        %v1189 = vpop.f32.mrf.mxu0
        %v1190 = vadd.f32 %v1170, %v1189
        %1191 = vdwg.mxu0
        %1192 = vmatpush.msra.mxu0 %v1074
        %1193 = vmatpush.msra.mxu0 %v1072
        %1194 = vmatpush.msra.mxu0 %v1070
        %1195 = vmatpush.msra.mxu0 %v1068
        %1196 = vmatpush.msra.mxu0 %v1066
        %1197 = vmatpush.msra.mxu0 %v1064
        %1198 = vmatpush.msra.mxu0 %v1062
        %1199 = vmatpush.msra.mxu0 %v1060
        %1200 = vmatpush.msra.mxu0 %v1058
        %1201 = vmatpush.msra.mxu0 %v1056
        %1202 = vmatpush.msra.mxu0 %v1054
        %1203 = vmatpush.msra.mxu0 %v1052
        %1204 = vmatpush.msra.mxu0 %v1050
        %1205 = vmatpush.msra.mxu0 %v1048
        %1206 = vmatpush.msra.mxu0 %v1046
        %1207 = vmatpush.msra.mxu0 %v1044
        %1208 = vmatmul.f32.gmra.mxu0 %v1096
        %v1209 = vpop.f32.mrf.mxu0
        %v1210 = vadd.f32 0.0, %v1209
        %1211 = vdwg.mxu0
        %1212 = vmatpush.msra.mxu0 0.0
        %1213 = vmatpush.msra.mxu0 0.0
        %1214 = vmatpush.msra.mxu0 0.0
        %1215 = vmatpush.msra.mxu0 0.0
        %1216 = vmatpush.msra.mxu0 0.0
        %1217 = vmatpush.msra.mxu0 0.0
        %1218 = vmatpush.msra.mxu0 0.0
        %1219 = vmatpush.msra.mxu0 %v1092
        %1220 = vmatpush.msra.mxu0 %v1090
        %1221 = vmatpush.msra.mxu0 %v1088
        %1222 = vmatpush.msra.mxu0 %v1086
        %1223 = vmatpush.msra.mxu0 %v1084
        %1224 = vmatpush.msra.mxu0 %v1082
        %1225 = vmatpush.msra.mxu0 %v1080
        %1226 = vmatpush.msra.mxu0 %v1078
        %1227 = vmatpush.msra.mxu0 %v1076
        %1228 = vmatmul.f32.gmra.mxu0 %v1150
        %v1229 = vpop.f32.mrf.mxu0
        %v1230 = vadd.f32 %v1210, %v1229
        %1231 = vdwg.mxu0
        %v1233 = vsel %vm470, %v1230, 0
        %1235 = vmatpush.msra.mxu0 %v1139
        %1236 = vmatpush.msra.mxu0 %v1138
        %1237 = vmatpush.msra.mxu0 %v1137
        %1238 = vmatpush.msra.mxu0 %v1136
        %1239 = vmatpush.msra.mxu0 %v1135
        %1240 = vmatpush.msra.mxu0 %v1134
        %1241 = vmatpush.msra.mxu0 %v1133
        %1242 = vmatpush.msra.mxu0 %v1132
        %1243 = vmatpush.msra.mxu0 %v1131
        %1244 = vmatpush.msra.mxu0 %v1130
        %1245 = vmatpush.msra.mxu0 %v1129
        %1246 = vmatpush.msra.mxu0 %v1128
        %1247 = vmatpush.msra.mxu0 %v1127
        %1248 = vmatpush.msra.mxu0 %v1126
        %1249 = vmatpush.msra.mxu0 %v1125
        %1250 = vmatpush.msra.mxu0 %v1124
        %1251 = vmatmul.f32.gmra.mxu0 %v1190
        %v1252 = vpop.f32.mrf.mxu0
        %v1253 = vadd.f32 0.0, %v1252
        %1254 = vdwg.mxu0
        %1255 = vmatpush.msra.mxu0 0.0
        %1256 = vmatpush.msra.mxu0 0.0
        %1257 = vmatpush.msra.mxu0 0.0
        %1258 = vmatpush.msra.mxu0 0.0
        %1259 = vmatpush.msra.mxu0 0.0
        %1260 = vmatpush.msra.mxu0 0.0
        %1261 = vmatpush.msra.mxu0 0.0
        %1262 = vmatpush.msra.mxu0 %v1148
        %1263 = vmatpush.msra.mxu0 %v1147
        %1264 = vmatpush.msra.mxu0 %v1146
        %1265 = vmatpush.msra.mxu0 %v1145
        %1266 = vmatpush.msra.mxu0 %v1144
        %1267 = vmatpush.msra.mxu0 %v1143
        %1268 = vmatpush.msra.mxu0 %v1142
        %1269 = vmatpush.msra.mxu0 %v1141
        %1270 = vmatpush.msra.mxu0 %v1140
        %1271 = vmatmul.f32.gmra.mxu0 %v1233
        %v1272 = vpop.f32.mrf.mxu0
        %v1273 = vadd.f32 %v1253, %v1272
        %1274 = vdwg.mxu0
        %1276 = vrot.lane.b32.xlu0 %v1273, 8
        %v1277 = vpop.permute.xlu0 %1276
        %vm1279 = vcmask 130112
        %1280 = vst.msk [vmem:[%s362] sm:$0xff] %vm1279, %v1277
        %s1281 = scalar_lea.vmem %s3, 24
        %v1282 = vld [vmem:[%s1281] sm:$0xff]
        %v1283 = vsel %vm597, %v1273, 0
        %1285 = vmatpush.msra.mxu0 0.0
        %1286 = vmatpush.msra.mxu0 0.0
        %1287 = vmatpush.msra.mxu0 0.0
        %1288 = vmatpush.msra.mxu0 0.0
        %1289 = vmatpush.msra.mxu0 0.0
        %1290 = vmatpush.msra.mxu0 0.0
        %1291 = vmatpush.msra.mxu0 0.0
        %1292 = vmatpush.msra.mxu0 0.0
        %1293 = vmatpush.msra.mxu0 0.0
        %1294 = vmatpush.msra.mxu0 0.0
        %1295 = vmatpush.msra.mxu0 0.0
        %1296 = vmatpush.msra.mxu0 0.0
        %1297 = vmatpush.msra.mxu0 0.0
        %1298 = vmatpush.msra.mxu0 0.0
        %1299 = vmatpush.msra.mxu0 0.0
        %1300 = vmatpush.msra.mxu0 %v1282
        %1301 = vmatmul.f32.gmra.mxu0 %v1283
        %v1302 = vpop.f32.mrf.mxu0
        %v1303 = vadd.f32 0.0, %v1302
        %1304 = vdwg.mxu0
        %v1305 = vmul.f32 %v1303, 0.85
        %v1306 = vadd.f32 %v363, %v1305
        %v1307 = vmax.f32 %v1306, 0.0
        %v1308 = vsel %vm597, %v1307, 0.0
        %v1309 = vrot.slane %v1308, 4
        %v1310 = vadd.f32 %v1308, %v1309
        %v1311 = vrot.slane %v1310, 2
        %v1312 = vadd.f32 %v1310, %v1311
        %v1313 = vrot.slane %v1312, 1
        %v1314 = vadd.f32 %v1312, %v1313
        %v1315 = vmul.f32 %v1314, %v639
        %v1316 = vadd.f32 %v1315, 1e-06
        %v1317 = vrcp.pop %v1316
        %v1318 = vmul.f32 %v1316, %v1317
        %v1319 = vsub.f32 1.0, %v1318
        %v1320 = vmul.f32 %v1317, %v1319
        %v1321 = vadd.f32 %v1317, %v1320
        %vm1322 = vweird.f32 %v1316
        %vm1323 = vweird.f32 %v1317
        %vm1324 = vmor %vm1322, %vm1323
        %v1325 = vsel %vm1324, %v1317, %v1321
        %v1326 = vand.u32 2147483647, %v1316
        %vm1327 = vcmp.eq.f32.partialorder %v1326, 8.507059e+37
        %v1328 = vand.u32 %v1316, 2147483648
        %v1329 = vor.u32 1.1754944e-38, %v1328
        %v1330 = vsel %vm1327, %v1329, %v1325
        %v1331 = vmul.f32 %v1307, %v1330
        %v1332 = vmax.f32 %v1331, 0.0
        %v1333 = vand.u32 2147483647, %v1331
        %v1334 = vsub.f32 0.0, %v1333
        %v1335 = vmul.f32 %v1334, 1.442695
        %v1336 = vpow.pop %v1335
        %v1337 = vadd.f32 %v1336, 1.0
        %v1338 = vlog2.pop %v1337
        %v1339 = vmul.f32 %v1338, 0.6931472
        %v1340 = vadd.f32 %v1332, %v1339
        %s1341 = scalar_lea.vmem %s3, 32
        %v1342 = vld [vmem:[%s1341] sm:$0xff]
        %v1344 = vsel %vm597, %v1340, 0
        %1346 = vmatpush.msra.mxu0 0.0
        %1347 = vmatpush.msra.mxu0 0.0
        %1348 = vmatpush.msra.mxu0 0.0
        %1349 = vmatpush.msra.mxu0 0.0
        %1350 = vmatpush.msra.mxu0 0.0
        %1351 = vmatpush.msra.mxu0 0.0
        %1352 = vmatpush.msra.mxu0 0.0
        %1353 = vmatpush.msra.mxu0 0.0
        %1354 = vmatpush.msra.mxu0 0.0
        %1355 = vmatpush.msra.mxu0 0.0
        %1356 = vmatpush.msra.mxu0 0.0
        %1357 = vmatpush.msra.mxu0 0.0
        %1358 = vmatpush.msra.mxu0 0.0
        %1359 = vmatpush.msra.mxu0 0.0
        %1360 = vmatpush.msra.mxu0 0.0
        %1361 = vmatpush.msra.mxu0 %v1342
        %1362 = vmatmul.f32.gmra.mxu0 %v1344
        %v1363 = vpop.f32.mrf.mxu0
        %v1364 = vadd.f32 0.0, %v1363
        %1365 = vdwg.mxu0
        %1366 = vmatpush.msra.mxu0 0.0
        %1367 = vmatpush.msra.mxu0 0.0
        %1368 = vmatpush.msra.mxu0 0.0
        %1369 = vmatpush.msra.mxu0 0.0
        %1370 = vmatpush.msra.mxu0 0.0
        %1371 = vmatpush.msra.mxu0 0.0
        %1372 = vmatpush.msra.mxu0 0.0
        %1373 = vmatpush.msra.mxu0 0.0
        %1374 = vmatpush.msra.mxu0 0.0
        %1375 = vmatpush.msra.mxu0 0.0
        %1376 = vmatpush.msra.mxu0 0.0
        %1377 = vmatpush.msra.mxu0 0.0
        %1378 = vmatpush.msra.mxu0 0.0
        %1379 = vmatpush.msra.mxu0 0.0
        %1380 = vmatpush.msra.mxu0 0.0
        %1381 = vmatpush.msra.mxu0 %v1364
        %1382 = vmatmul.f32.gmra.mxu0 %v1283
        %v1383 = vpop.f32.mrf.mxu0
        %v1384 = vadd.f32 0.0, %v1383
        %1385 = vdwg.mxu0
        %v1386 = vmul.f32 %v1384, 0.85
        %v1387 = vadd.f32 %v363, %v1386
        %v1388 = vmax.f32 %v1387, 0.0
        %v1389 = vsel %vm597, %v1388, 0.0
        %v1390 = vrot.slane %v1389, 4
        %v1391 = vadd.f32 %v1389, %v1390
        %v1392 = vrot.slane %v1391, 2
        %v1393 = vadd.f32 %v1391, %v1392
        %v1394 = vrot.slane %v1393, 1
        %v1395 = vadd.f32 %v1393, %v1394
        %v1396 = vmul.f32 %v1395, %v639
        %v1397 = vadd.f32 %v1396, 1e-06
        %v1398 = vrcp.pop %v1397
        %v1399 = vmul.f32 %v1397, %v1398
        %v1400 = vsub.f32 1.0, %v1399
        %v1401 = vmul.f32 %v1398, %v1400
        %v1402 = vadd.f32 %v1398, %v1401
        %vm1403 = vweird.f32 %v1397
        %vm1404 = vweird.f32 %v1398
        %vm1405 = vmor %vm1403, %vm1404
        %v1406 = vsel %vm1405, %v1398, %v1402
        %v1407 = vand.u32 2147483647, %v1397
        %vm1408 = vcmp.eq.f32.partialorder %v1407, 8.507059e+37
        %v1409 = vand.u32 %v1397, 2147483648
        %v1410 = vor.u32 1.1754944e-38, %v1409
        %v1411 = vsel %vm1408, %v1410, %v1406
        %v1412 = vmul.f32 %v1388, %v1411
        %v1413 = vmax.f32 %v1412, 0.0
        %v1414 = vand.u32 2147483647, %v1412
        %v1415 = vsub.f32 0.0, %v1414
        %v1416 = vmul.f32 %v1415, 1.442695
        %v1417 = vpow.pop %v1416
        %v1418 = vadd.f32 %v1417, 1.0
        %v1419 = vlog2.pop %v1418
        %v1420 = vmul.f32 %v1419, 0.6931472
        %v1421 = vadd.f32 %v1413, %v1420
        %s1422 = scalar_lea.vmem %s3, 40
        %v1423 = vld [vmem:[%s1422] sm:$0xff]
        %v1425 = vsel %vm597, %v1421, 0
        %1427 = vmatpush.msra.mxu0 0.0
        %1428 = vmatpush.msra.mxu0 0.0
        %1429 = vmatpush.msra.mxu0 0.0
        %1430 = vmatpush.msra.mxu0 0.0
        %1431 = vmatpush.msra.mxu0 0.0
        %1432 = vmatpush.msra.mxu0 0.0
        %1433 = vmatpush.msra.mxu0 0.0
        %1434 = vmatpush.msra.mxu0 0.0
        %1435 = vmatpush.msra.mxu0 0.0
        %1436 = vmatpush.msra.mxu0 0.0
        %1437 = vmatpush.msra.mxu0 0.0
        %1438 = vmatpush.msra.mxu0 0.0
        %1439 = vmatpush.msra.mxu0 0.0
        %1440 = vmatpush.msra.mxu0 0.0
        %1441 = vmatpush.msra.mxu0 0.0
        %1442 = vmatpush.msra.mxu0 %v1423
        %1443 = vmatmul.f32.gmra.mxu0 %v1425
        %v1444 = vpop.f32.mrf.mxu0
        %v1445 = vadd.f32 0.0, %v1444
        %1446 = vdwg.mxu0
        %1447 = vmatpush.msra.mxu0 0.0
        %1448 = vmatpush.msra.mxu0 0.0
        %1449 = vmatpush.msra.mxu0 0.0
        %1450 = vmatpush.msra.mxu0 0.0
        %1451 = vmatpush.msra.mxu0 0.0
        %1452 = vmatpush.msra.mxu0 0.0
        %1453 = vmatpush.msra.mxu0 0.0
        %1454 = vmatpush.msra.mxu0 0.0
        %1455 = vmatpush.msra.mxu0 0.0
        %1456 = vmatpush.msra.mxu0 0.0
        %1457 = vmatpush.msra.mxu0 0.0
        %1458 = vmatpush.msra.mxu0 0.0
        %1459 = vmatpush.msra.mxu0 0.0
        %1460 = vmatpush.msra.mxu0 0.0
        %1461 = vmatpush.msra.mxu0 0.0
        %1462 = vmatpush.msra.mxu0 %v1445
        %1463 = vmatmul.f32.gmra.mxu0 %v1283
        %v1464 = vpop.f32.mrf.mxu0
        %v1465 = vadd.f32 0.0, %v1464
        %1466 = vdwg.mxu0
        %v1467 = vmul.f32 %v1465, 0.85
        %v1468 = vadd.f32 %v363, %v1467
        %v1469 = vmax.f32 %v1468, 0.0
        %v1470 = vsel %vm597, %v1469, 0.0
        %v1471 = vrot.slane %v1470, 4
        %v1472 = vadd.f32 %v1470, %v1471
        %v1473 = vrot.slane %v1472, 2
        %v1474 = vadd.f32 %v1472, %v1473
        %v1475 = vrot.slane %v1474, 1
        %v1476 = vadd.f32 %v1474, %v1475
        %v1477 = vmul.f32 %v1476, %v639
        %v1478 = vadd.f32 %v1477, 1e-06
        %v1479 = vrcp.pop %v1478
        %v1480 = vmul.f32 %v1478, %v1479
        %v1481 = vsub.f32 1.0, %v1480
        %v1482 = vmul.f32 %v1479, %v1481
        %v1483 = vadd.f32 %v1479, %v1482
        %vm1484 = vweird.f32 %v1478
        %vm1485 = vweird.f32 %v1479
        %vm1486 = vmor %vm1484, %vm1485
        %v1487 = vsel %vm1486, %v1479, %v1483
        %v1488 = vand.u32 2147483647, %v1478
        %vm1489 = vcmp.eq.f32.partialorder %v1488, 8.507059e+37
        %v1490 = vand.u32 %v1478, 2147483648
        %v1491 = vor.u32 1.1754944e-38, %v1490
        %v1492 = vsel %vm1489, %v1491, %v1487
        %v1493 = vmul.f32 %v1469, %v1492
        %v1494 = vmax.f32 %v1493, 0.0
        %v1495 = vand.u32 2147483647, %v1493
        %v1496 = vsub.f32 0.0, %v1495
        %v1497 = vmul.f32 %v1496, 1.442695
        %v1498 = vpow.pop %v1497
        %v1499 = vadd.f32 %v1498, 1.0
        %v1500 = vlog2.pop %v1499
        %v1501 = vmul.f32 %v1500, 0.6931472
        %v1502 = vadd.f32 %v1494, %v1501
        %s1503 = scalar_lea.vmem %s4, 64
        %v1504 = vld [vmem:[%s1503] sm:$0xff]
        %v1505 = vld [vmem:[%s1503 + $0x8] sm:$0xff]
        %v1506 = vld [vmem:[%s1503 + $0x10] sm:$0xff]
        %v1507 = vld [vmem:[%s1503 + $0x18] sm:$0xff]
        %v1508 = vld [vmem:[%s1503 + $0x20] sm:$0xff]
        %v1509 = vld [vmem:[%s1503 + $0x28] sm:$0xff]
        %v1510 = vld [vmem:[%s1503 + $0x30] sm:$0xff]
        %v1511 = vld [vmem:[%s1503 + $0x38] sm:$0xff]
        %v1512 = vsel %vm836, %v1502, 0.0
        %v1514 = vsel %vm597, %v1512, 0
        %1516 = vmatpush.msra.mxu0 0.0
        %1517 = vmatpush.msra.mxu0 0.0
        %1518 = vmatpush.msra.mxu0 0.0
        %1519 = vmatpush.msra.mxu0 0.0
        %1520 = vmatpush.msra.mxu0 0.0
        %1521 = vmatpush.msra.mxu0 0.0
        %1522 = vmatpush.msra.mxu0 0.0
        %1523 = vmatpush.msra.mxu0 0.0
        %1524 = vmatpush.msra.mxu0 0.0
        %1525 = vmatpush.msra.mxu0 0.0
        %1526 = vmatpush.msra.mxu0 0.0
        %1527 = vmatpush.msra.mxu0 0.0
        %1528 = vmatpush.msra.mxu0 0.0
        %1529 = vmatpush.msra.mxu0 0.0
        %1530 = vmatpush.msra.mxu0 0.0
        %1531 = vmatpush.msra.mxu0 %v1504
        %1532 = vmatmul.f32.gmra.mxu0 %v1514
        %v1533 = vpop.f32.mrf.mxu0
        %v1534 = vadd.f32 0.0, %v1533
        %1535 = vdwg.mxu0
        %v1536 = vadd.f32 %v1041, %v1534
        %v1537 = vsel %vm838, %v1502, 0.0
        %v1539 = vsel %vm597, %v1537, 0
        %1541 = vmatpush.msra.mxu0 0.0
        %1542 = vmatpush.msra.mxu0 0.0
        %1543 = vmatpush.msra.mxu0 0.0
        %1544 = vmatpush.msra.mxu0 0.0
        %1545 = vmatpush.msra.mxu0 0.0
        %1546 = vmatpush.msra.mxu0 0.0
        %1547 = vmatpush.msra.mxu0 0.0
        %1548 = vmatpush.msra.mxu0 0.0
        %1549 = vmatpush.msra.mxu0 0.0
        %1550 = vmatpush.msra.mxu0 0.0
        %1551 = vmatpush.msra.mxu0 0.0
        %1552 = vmatpush.msra.mxu0 0.0
        %1553 = vmatpush.msra.mxu0 0.0
        %1554 = vmatpush.msra.mxu0 0.0
        %1555 = vmatpush.msra.mxu0 0.0
        %1556 = vmatpush.msra.mxu0 %v1505
        %1557 = vmatmul.f32.gmra.mxu0 %v1539
        %v1558 = vpop.f32.mrf.mxu0
        %v1559 = vadd.f32 0.0, %v1558
        %1560 = vdwg.mxu0
        %v1561 = vadd.f32 %v1536, %v1559
        %v1562 = vsel %vm886, %v1502, 0.0
        %v1564 = vsel %vm597, %v1562, 0
        %1566 = vmatpush.msra.mxu0 0.0
        %1567 = vmatpush.msra.mxu0 0.0
        %1568 = vmatpush.msra.mxu0 0.0
        %1569 = vmatpush.msra.mxu0 0.0
        %1570 = vmatpush.msra.mxu0 0.0
        %1571 = vmatpush.msra.mxu0 0.0
        %1572 = vmatpush.msra.mxu0 0.0
        %1573 = vmatpush.msra.mxu0 0.0
        %1574 = vmatpush.msra.mxu0 0.0
        %1575 = vmatpush.msra.mxu0 0.0
        %1576 = vmatpush.msra.mxu0 0.0
        %1577 = vmatpush.msra.mxu0 0.0
        %1578 = vmatpush.msra.mxu0 0.0
        %1579 = vmatpush.msra.mxu0 0.0
        %1580 = vmatpush.msra.mxu0 0.0
        %1581 = vmatpush.msra.mxu0 %v1506
        %1582 = vmatmul.f32.gmra.mxu0 %v1564
        %v1583 = vpop.f32.mrf.mxu0
        %v1584 = vadd.f32 0.0, %v1583
        %1585 = vdwg.mxu0
        %v1586 = vadd.f32 %v1561, %v1584
        %v1587 = vsel %vm912, %v1502, 0.0
        %v1589 = vsel %vm597, %v1587, 0
        %1591 = vmatpush.msra.mxu0 0.0
        %1592 = vmatpush.msra.mxu0 0.0
        %1593 = vmatpush.msra.mxu0 0.0
        %1594 = vmatpush.msra.mxu0 0.0
        %1595 = vmatpush.msra.mxu0 0.0
        %1596 = vmatpush.msra.mxu0 0.0
        %1597 = vmatpush.msra.mxu0 0.0
        %1598 = vmatpush.msra.mxu0 0.0
        %1599 = vmatpush.msra.mxu0 0.0
        %1600 = vmatpush.msra.mxu0 0.0
        %1601 = vmatpush.msra.mxu0 0.0
        %1602 = vmatpush.msra.mxu0 0.0
        %1603 = vmatpush.msra.mxu0 0.0
        %1604 = vmatpush.msra.mxu0 0.0
        %1605 = vmatpush.msra.mxu0 0.0
        %1606 = vmatpush.msra.mxu0 %v1507
        %1607 = vmatmul.f32.gmra.mxu0 %v1589
        %v1608 = vpop.f32.mrf.mxu0
        %v1609 = vadd.f32 0.0, %v1608
        %1610 = vdwg.mxu0
        %v1611 = vadd.f32 %v1586, %v1609
        %v1612 = vsel %vm938, %v1502, 0.0
        %v1614 = vsel %vm597, %v1612, 0
        %1616 = vmatpush.msra.mxu0 0.0
        %1617 = vmatpush.msra.mxu0 0.0
        %1618 = vmatpush.msra.mxu0 0.0
        %1619 = vmatpush.msra.mxu0 0.0
        %1620 = vmatpush.msra.mxu0 0.0
        %1621 = vmatpush.msra.mxu0 0.0
        %1622 = vmatpush.msra.mxu0 0.0
        %1623 = vmatpush.msra.mxu0 0.0
        %1624 = vmatpush.msra.mxu0 0.0
        %1625 = vmatpush.msra.mxu0 0.0
        %1626 = vmatpush.msra.mxu0 0.0
        %1627 = vmatpush.msra.mxu0 0.0
        %1628 = vmatpush.msra.mxu0 0.0
        %1629 = vmatpush.msra.mxu0 0.0
        %1630 = vmatpush.msra.mxu0 0.0
        %1631 = vmatpush.msra.mxu0 %v1508
        %1632 = vmatmul.f32.gmra.mxu0 %v1614
        %v1633 = vpop.f32.mrf.mxu0
        %v1634 = vadd.f32 0.0, %v1633
        %1635 = vdwg.mxu0
        %v1636 = vadd.f32 %v1611, %v1634
        %v1637 = vsel %vm964, %v1502, 0.0
        %v1639 = vsel %vm597, %v1637, 0
        %1641 = vmatpush.msra.mxu0 0.0
        %1642 = vmatpush.msra.mxu0 0.0
        %1643 = vmatpush.msra.mxu0 0.0
        %1644 = vmatpush.msra.mxu0 0.0
        %1645 = vmatpush.msra.mxu0 0.0
        %1646 = vmatpush.msra.mxu0 0.0
        %1647 = vmatpush.msra.mxu0 0.0
        %1648 = vmatpush.msra.mxu0 0.0
        %1649 = vmatpush.msra.mxu0 0.0
        %1650 = vmatpush.msra.mxu0 0.0
        %1651 = vmatpush.msra.mxu0 0.0
        %1652 = vmatpush.msra.mxu0 0.0
        %1653 = vmatpush.msra.mxu0 0.0
        %1654 = vmatpush.msra.mxu0 0.0
        %1655 = vmatpush.msra.mxu0 0.0
        %1656 = vmatpush.msra.mxu0 %v1509
        %1657 = vmatmul.f32.gmra.mxu0 %v1639
        %v1658 = vpop.f32.mrf.mxu0
        %v1659 = vadd.f32 0.0, %v1658
        %1660 = vdwg.mxu0
        %v1661 = vadd.f32 %v1636, %v1659
        %v1662 = vsel %vm990, %v1502, 0.0
        %v1664 = vsel %vm597, %v1662, 0
        %1666 = vmatpush.msra.mxu0 0.0
        %1667 = vmatpush.msra.mxu0 0.0
        %1668 = vmatpush.msra.mxu0 0.0
        %1669 = vmatpush.msra.mxu0 0.0
        %1670 = vmatpush.msra.mxu0 0.0
        %1671 = vmatpush.msra.mxu0 0.0
        %1672 = vmatpush.msra.mxu0 0.0
        %1673 = vmatpush.msra.mxu0 0.0
        %1674 = vmatpush.msra.mxu0 0.0
        %1675 = vmatpush.msra.mxu0 0.0
        %1676 = vmatpush.msra.mxu0 0.0
        %1677 = vmatpush.msra.mxu0 0.0
        %1678 = vmatpush.msra.mxu0 0.0
        %1679 = vmatpush.msra.mxu0 0.0
        %1680 = vmatpush.msra.mxu0 0.0
        %1681 = vmatpush.msra.mxu0 %v1510
        %1682 = vmatmul.f32.gmra.mxu0 %v1664
        %v1683 = vpop.f32.mrf.mxu0
        %v1684 = vadd.f32 0.0, %v1683
        %1685 = vdwg.mxu0
        %v1686 = vadd.f32 %v1661, %v1684
        %v1687 = vsel %vm1016, %v1502, 0.0
        %v1689 = vsel %vm597, %v1687, 0
        %1691 = vmatpush.msra.mxu0 0.0
        %1692 = vmatpush.msra.mxu0 0.0
        %1693 = vmatpush.msra.mxu0 0.0
        %1694 = vmatpush.msra.mxu0 0.0
        %1695 = vmatpush.msra.mxu0 0.0
        %1696 = vmatpush.msra.mxu0 0.0
        %1697 = vmatpush.msra.mxu0 0.0
        %1698 = vmatpush.msra.mxu0 0.0
        %1699 = vmatpush.msra.mxu0 0.0
        %1700 = vmatpush.msra.mxu0 0.0
        %1701 = vmatpush.msra.mxu0 0.0
        %1702 = vmatpush.msra.mxu0 0.0
        %1703 = vmatpush.msra.mxu0 0.0
        %1704 = vmatpush.msra.mxu0 0.0
        %1705 = vmatpush.msra.mxu0 0.0
        %1706 = vmatpush.msra.mxu0 %v1511
        %1707 = vmatmul.f32.gmra.mxu0 %v1689
        %v1708 = vpop.f32.mrf.mxu0
        %v1709 = vadd.f32 0.0, %v1708
        %1710 = vdwg.mxu0
        %v1711 = vadd.f32 %v1686, %v1709
        %v1712 = vld [vmem:[%s5] sm:$0xff]
        %v1713 = vld [vmem:[%s5 + $0x8] sm:$0xff]
        %vm1714 = vcmask 130048
        %v1716 = vsel %vm1714, %v1711, 0
        %1718 = vmatpush.msra.mxu0 0.0
        %1719 = vmatpush.msra.mxu0 0.0
        %1720 = vmatpush.msra.mxu0 0.0
        %1721 = vmatpush.msra.mxu0 0.0
        %1722 = vmatpush.msra.mxu0 0.0
        %1723 = vmatpush.msra.mxu0 0.0
        %1724 = vmatpush.msra.mxu0 0.0
        %1725 = vmatpush.msra.mxu0 0.0
        %1726 = vmatpush.msra.mxu0 0.0
        %1727 = vmatpush.msra.mxu0 0.0
        %1728 = vmatpush.msra.mxu0 0.0
        %1729 = vmatpush.msra.mxu0 0.0
        %1730 = vmatpush.msra.mxu0 0.0
        %1731 = vmatpush.msra.mxu0 0.0
        %1732 = vmatpush.msra.mxu0 %v1713
        %1733 = vmatpush.msra.mxu0 %v1712
        %1734 = vmatmul.f32.gmra.mxu0 %v1716
        %v1735 = vpop.f32.mrf.mxu0
        %v1736 = vadd.f32 0.0, %v1735
        %1737 = vdwg.mxu0
        %vm1738 = vcmask 15360
        %v1739 = vsel %vm1738, %v1736, 0.0
        %v1740 = vrot.slane %v1739, 4
        %v1741 = vadd.f32 %v1739, %v1740
        %v1742 = vrot.slane %v1741, 2
        %v1743 = vadd.f32 %v1741, %v1742
        %v1744 = vrot.slane %v1743, 1
        %v1745 = vadd.f32 %v1743, %v1744
        %v1746 = vld [vmem:[%s6] sm:$0x1]
        %v1747 = vadd.f32 %v1745, %v1746
        %vm1748 = vcmask 8192
        %1749 = vst.msk [vmem:[%s352] sm:$0x1] %vm1748, %v1747
        %s1750 = sand.u32 %s208, 1
        %s1751 = scalar_lea.sflag [#allocation4], %s1750
        %s1752 = sand.u32 %s208, 1
        %s1753 = scalar_lea.vmem [#allocation5], %s1752
        %p1754 = scmp.lt.s32.totalorder %s27, 1
        %s1755 = scalar_select %p1754, %s27, 1
        %s1756 = smul.addr %s1755, 8
        %s1757 = scalar_lea.vmem %s9, %s1756
        // Predicated region
        $region57: #{model_forward.1} parent=51 // pred_check
          %p1758 = pneg %p218
        $region58: #{model_forward.1} parent=51 // pred_check_branch
          %1760 = sbr.rel (%p1758) target = $region60
        $region59: #{model_forward.1} parent=51 // pred_region
          %1762 = vsyncadd %s1751, 0
          %s1763 = scalar_lea.hbm %s8, %s27
          %s1765 = sshll.u32 %s1753, 4
          %s1766 = int_to_ptr.vmem [resolvable:$true] %s1765
          %s1767 = sshll.u32 %s1763, 4
          %s1768 = int_to_ptr.hbm [resolvable:$true] %s1767
          %1770 = dma.vmem_to_hbm [thread:$0]  %s1766, 16, %s1768, %s1751
        $region60: #{model_forward.1} parent=51 // pred_fallthru
          _
        // Predicated region
        $region61: #{model_forward.1} parent=51 // pred_check
          %p1771 = pneg %p244
        $region62: #{model_forward.1} parent=51 // pred_check_branch
          %1773 = sbr.rel (%p1771) target = $region64
        $region63: #{model_forward.1} parent=51 // pred_region
          _
        $region64: #{model_forward.1} parent=51 // pred_fallthru
          _
      $region52: #{model_forward.1} parent=5 // pred_fallthru
        _
      %p1774 = scmp.le.s32.totalorder 2, %s22
      // Predicated region
      $region65: #{model_forward.1} parent=5 // pred_check
        %p1775 = pneg %p1774
      $region66: #{model_forward.1} parent=5 // pred_check_branch
        %1777 = sbr.rel (%p1775) target = $region68
      $region67: #{model_forward.1} parent=5 // pred_region
        %s1778 = ssub.s32 %s22, 2
        // Predicated region
        $region69: #{model_forward.1} parent=67 // pred_check
          %p1779 = pneg %p224
        $region70: #{model_forward.1} parent=67 // pred_check_branch
          %1781 = sbr.rel (%p1779) target = $region72
        $region71: #{model_forward.1} parent=67 // pred_region
          %s1782 = sand.u32 %s209, 1
          %s1783 = scalar_lea.sflag [#allocation4], %s1782
          %s1784 = sand.u32 %s209, 1
          %s1785 = scalar_lea.vmem [#allocation5], %s1784
          %1787 = dma.done %s1783, 16
        $region72: #{model_forward.1} parent=67 // pred_fallthru
          _
        // Predicated region
        $region73: #{model_forward.1} parent=67 // pred_check
          %p1788 = pneg %p250
        $region74: #{model_forward.1} parent=67 // pred_check_branch
          %1790 = sbr.rel (%p1788) target = $region76
        $region75: #{model_forward.1} parent=67 // pred_region
          %p1791 = scmp.lt.s32.totalorder %s28, 1
          %s1792 = scalar_select %p1791, %s28, 1
          %s1793 = smul.addr %s1792, 8
          %s1794 = scalar_lea.vmem %s9, %s1793
        $region76: #{model_forward.1} parent=67 // pred_fallthru
          _
      $region68: #{model_forward.1} parent=5 // pred_fallthru
        _
    $region6: #{model_forward.1} parent=1 // loop_footer
      %s26 = sadd.s32 1, %s22
    $region7: #{model_forward.1} parent=1 // loop_footer_branch
      %21 = sbr.rel target = $region3
    $region8: #{model_forward.1} parent=1 // loop_exit
      _
    %1795 = vsyncpa [#allocation3], 1
    %s1796 = scalar_lea.sflag [#allocation3], 1
    %1797 = vsyncpa %s1796, 1
    %1798 = vsyncpa [#allocation4], 1
    %s1799 = scalar_lea.sflag [#allocation4], 1
    %1800 = vsyncpa %s1799, 1

</llo_original>
